<compile_context>
chip_gen: v5e
topology: v5e:2x2
jax: 0.10.0
libtpu: 0.0.40
codegen_flags: <defaults>
</compile_context>

<pallas_src>
import functools

import jax
import jax.numpy as jnp
from jax.experimental import pallas as pl
from jax.experimental.pallas import tpu as pltpu


def _gin_kernel(x_ref, a_ref, o_ref, *scratch,
                tm, num_layers, num_slots, scale, deg_col, a_resident):
    """One grid step = (layer l, row-tile i): rows [i*tm, (i+1)*tm) of layer l's output."""
    if a_resident:
        a_vmem, scr_ref, dinv_ref, dma_sem = scratch
    else:
        scr_ref, dinv_ref = scratch

    l = pl.program_id(0)
    i = pl.program_id(1)
    row0 = pl.multiple_of(i * tm, tm)

    if a_resident:
        # One-time DMA of the whole (padded) adjacency into VMEM; it stays resident for
        # every later (layer, row-tile) step, so A is read from HBM exactly once.
        @pl.when((l == 0) & (i == 0))
        def _():
            cp = pltpu.make_async_copy(a_ref, a_vmem, dma_sem)
            cp.start()
            cp.wait()

        a = a_vmem[pl.ds(row0, tm), :]                 # (tm, n_pad) bf16, exact 0/1
    else:
        a = a_ref[...]                                 # streamed (tm, n_pad) slab

    def finish(agg, dinv, h_dst_fn):
        res = agg * dinv                               # mean aggregation, f32
        if scale != 0.0:
            # (1 + eps) * h self-term; compiled out for GIN_noparam (init_eps=-1 -> 0).
            res = res + jnp.float32(scale) * h_dst_fn().astype(jnp.float32)
        o_ref[0] = res.astype(o_ref.dtype)             # lane-dense bf16 store
        if num_layers > 1:
            dst = (l % num_slots) if num_slots > 1 else 0
            @pl.when(l < num_layers - 1)
            def _():
                scr_ref[dst, pl.ds(row0, tm), :] = res.astype(jnp.bfloat16)

    @pl.when(l == 0)
    def _():
        # Source features for layer 0 are X (resident input block).
        agg = jnp.dot(a, x_ref[...], preferred_element_type=jnp.float32)   # MXU, f32 acc
        if deg_col is not None:
            # Ones-column trick: column `deg_col` of X was set to 1, so this column of
            # the matmul result IS the in-degree -- exact, zero extra MXU/VPU work.
            deg = agg[:, deg_col:deg_col + 1]
        else:
            # Fallback (F already a multiple of 128): skinny MXU dot, still no f32
            # materialization of the A tile.
            ones = jnp.ones((a.shape[1], 1), jnp.bfloat16)
            deg = jnp.dot(a, ones, preferred_element_type=jnp.float32)
        dinv = jnp.where(deg > 0.0, 1.0 / jnp.maximum(deg, 1.0), 0.0)      # exact f32
        dinv_ref[pl.ds(row0, tm), :] = dinv            # cache: layer-invariant
        finish(agg, dinv, lambda: x_ref[pl.ds(row0, tm), :])

    if num_layers > 1:
        @pl.when(l > 0)
        def _():
            src = ((l - 1) % num_slots) if num_slots > 1 else 0
            h_src = scr_ref[src]                        # exactly one slot loaded
            agg = jnp.dot(a, h_src, preferred_element_type=jnp.float32)
            dinv = dinv_ref[pl.ds(row0, tm), :]         # cached 1/deg
            finish(agg, dinv, lambda: scr_ref[src, pl.ds(row0, tm), :])


def _round_up(x, m):
    return ((x + m - 1) // m) * m


def _vmem_capacity_bytes():
    try:
        info = pltpu.get_tpu_info()
        cap = getattr(info, "vmem_capacity_bytes", None)
        if cap:
            return int(cap)
    except Exception:
        pass
    return 64 * 1024 * 1024   # conservative default (v7x per-core VMEM)


def _plan(n, f, num_layers):
    n_pad = _round_up(max(n, 1), 128)     # lane-dense K dim for A @ H
    f_pad = _round_up(max(f, 1), 128)     # lane-dense feature / output dim
    num_slots = 1 if num_layers <= 2 else 2

    cap = _vmem_capacity_bytes()
    budget = (cap * 3) // 4               # ~96 MiB on 128 MiB parts, ~48 MiB on v7x

    tm_cands = [t for t in (256, 128, 64, 32, 16, 8) if t <= n_pad and n_pad % t == 0]
    if not tm_cands:
        tm_cands = [8]

    def common_bytes(tm):
        x_in = 2 * n_pad * f_pad * 2                 # X input block (double-buffered, bf16)
        scr = num_slots * n_pad * f_pad * 2          # intermediate bf16 slots
        dinv = 512 * n_pad                           # (n_pad, 1) f32, lane-padded layout
        out = 2 * tm * f_pad * 2                     # bf16 output tile (double-buffered)
        tmp = tm * n_pad * 2 + 2 * tm * f_pad * 4    # A row slice / f32 agg transients
        return x_in + scr + dinv + out + tmp

    # Preferred: whole adjacency resident in VMEM (single HBM read across all layers).
    a_resident, tm, need = False, tm_cands[-1], None
    for t in tm_cands:
        nd = n_pad * n_pad * 2 + common_bytes(t)
        if nd <= budget:
            a_resident, tm, need = True, t, nd
            break
    if not a_resident:
        # Fallback: stream (tm, n_pad) row slabs of A (re-read each layer, as before).
        for t in tm_cands:
            nd = 2 * t * n_pad * 2 + common_bytes(t)
            if nd <= budget:
                tm, need = t, nd
                break
        if need is None:
            tm = tm_cands[-1]
            need = 2 * tm * n_pad * 2 + common_bytes(tm)
        # TODO(synk): for graphs where even an (8, N) A slab + resident features exceed
        # VMEM, add a trailing K grid axis over A columns with an f32 accumulator.

    vmem_limit = int(max(budget, min(need + (8 << 20), (cap * 95) // 100)))
    return tm, n_pad, f_pad, num_slots, a_resident, vmem_limit


def _pad_cast(x, shape, dtype):
    if tuple(x.shape) == tuple(shape) and x.dtype == dtype:
        return x
    out = jnp.zeros(shape, dtype)
    return out.at[: x.shape[0], : x.shape[1]].set(x.astype(dtype))


@functools.partial(jax.jit, static_argnames=("num_layers", "eps"))
def gin_noparam_forward(A, X, *, num_layers=2, eps=-1.0):
    """h_final = concat([X, gnn(X), gnn(gnn(X)), ...], -1); gnn = GINConv(None, 'mean', eps)."""
    if num_layers <= 0:
        return X
    n = A.shape[0]
    f = X.shape[1]
    tm, n_pad, f_pad, num_slots, a_resident, vmem_limit = _plan(n, f, num_layers)
    n_row_tiles = n_pad // tm

    # Zero padding is exact: padded nodes have degree 0 (-> output 0) and contribute 0.
    a_p = _pad_cast(A, (n_pad, n_pad), jnp.bfloat16)   # 0/1 values exact in bf16
    x_p = _pad_cast(X, (n_pad, f_pad), jnp.bfloat16)

    # Plant a ones-column in a spare padding lane so the layer-0 matmul also produces
    # the in-degree (exact f32 counts via MXU accumulation) for free.
    if f < f_pad:
        deg_col = f
        x_p = x_p.at[:, deg_col].set(1.0)
    else:
        deg_col = None

    if a_resident:
        a_spec = pl.BlockSpec(memory_space=pl.ANY)     # raw HBM ref; manual one-time DMA
        scratch_shapes = [
            pltpu.VMEM((n_pad, n_pad), jnp.bfloat16),          # resident A (single copy)
            pltpu.VMEM((num_slots, n_pad, f_pad), jnp.bfloat16),  # intermediate layer(s)
            pltpu.VMEM((n_pad, 1), jnp.float32),               # cached 1/deg
            pltpu.SemaphoreType.DMA(()),
        ]
    else:
        a_spec = pl.BlockSpec((tm, n_pad), lambda l, i: (i, 0))   # streamed row slab
        scratch_shapes = [
            pltpu.VMEM((num_slots, n_pad, f_pad), jnp.bfloat16),
            pltpu.VMEM((n_pad, 1), jnp.float32),
        ]

    kernel = functools.partial(
        _gin_kernel, tm=tm, num_layers=num_layers, num_slots=num_slots,
        scale=1.0 + float(eps), deg_col=deg_col, a_resident=a_resident)

    layer_outs = pl.pallas_call(
        kernel,
        out_shape=jax.ShapeDtypeStruct((num_layers, n_pad, f_pad), jnp.bfloat16),
        grid_spec=pltpu.PrefetchScalarGridSpec(
            num_scalar_prefetch=0,
            grid=(num_layers, n_row_tiles),
            in_specs=[
                # X: constant block index -> DMA'd once, stays VMEM-resident.
                pl.BlockSpec((n_pad, f_pad), lambda l, i: (0, 0)),
                a_spec,
            ],
            out_specs=pl.BlockSpec((1, tm, f_pad), lambda l, i: (l, i, 0)),
            scratch_shapes=scratch_shapes,
        ),
        compiler_params=pltpu.CompilerParams(
            # Layer l+1 reads all rows of layer l from core-private scratch, so both grid
            # axes must run sequentially in order on one TensorCore.
            # TODO(synk): v7x dual-TC variant: per-layer calls with a "parallel" row axis.
            dimension_semantics=("arbitrary", "arbitrary"),
            vmem_limit_bytes=vmem_limit,
        ),
    )(x_p, a_p)

    pieces = [X] + [layer_outs[l, :n, :f].astype(X.dtype) for l in range(num_layers)]
    # NOTE: torch forward also executes `print(h_final)`; that host-side debug print is omitted.
    return jnp.concatenate(pieces, axis=-1)


def gin_noparam_reference(A, X, *, num_layers=2, eps=-1.0):
    """Pure-JAX f32 reference of GIN_noparam.forward (dense-graph form)."""
    deg = jnp.sum(A, axis=1, keepdims=True)
    dinv = jnp.where(deg > 0, 1.0 / jnp.maximum(deg, 1.0), 0.0)
    h = X
    pieces = [X]
    for _ in range(num_layers):
        h = (1.0 + eps) * h + (A @ h) * dinv
        pieces.append(h)
    return jnp.concatenate(pieces, axis=-1)


if __name__ == "__main__":
    key = jax.random.PRNGKey(0)
    k_graph, k_feat = jax.random.split(key)

    N = 256          # nodes
    in_feats = 16    # feature width of graph.ndata['feature']
    num_layers = 2   # GIN_noparam default

    # Deterministic sparse-ish adjacency (no self loops).
    A = jax.random.bernoulli(k_graph, p=0.08, shape=(N, N)).astype(jnp.float32)
    A = A * (1.0 - jnp.eye(N, dtype=jnp.float32))
    X = jax.random.normal(k_feat, (N, in_feats), jnp.float32)

    out = gin_noparam_forward(A, X, num_layers=num_layers)
    out = jax.block_until_ready(out)

    assert out.shape == (N, (num_layers + 1) * in_feats), out.shape
    assert out.dtype == jnp.float32, out.dtype

    ref = gin_noparam_reference(A, X, num_layers=num_layers)
    max_err = float(jnp.max(jnp.abs(out - ref)))
    assert bool(jnp.allclose(out, ref, atol=2e-2, rtol=2e-2)), f"max abs err {max_err}"

    print("KERNEL_OK")
</pallas_src>

<mosaic_0001>
module attributes {stable_mosaic.version = 11 : i64} {
  func.func @_gin_kernel(%arg0: i32, %arg1: i32, %arg2: memref<256x128xbf16, #tpu.memory_space<vmem>>, %arg3: memref<256x256xbf16, #tpu.memory_space<any>>, %arg4: memref<1x256x128xbf16, #tpu.memory_space<vmem>>, %arg5: memref<256x256xbf16, #tpu.memory_space<vmem>>, %arg6: memref<1x256x128xbf16, #tpu.memory_space<vmem>>, %arg7: memref<256x1xf32, #tpu.memory_space<vmem>>, %arg8: memref<!tpu.dma_semaphore, #tpu.memory_space<semaphore_mem>>) attributes {dimension_semantics = [#tpu.dimension_semantics<arbitrary>, #tpu.dimension_semantics<arbitrary>], iteration_bounds = array<i64: 2, 1>, scalar_prefetch = 0 : i64, scratch_operands = 4 : i64, tpu.core_type = #tpu.core_type<tc>, window_params = [{pipeline_mode = #tpu.pipeline_mode<synchronous>, transform_indices = @transform_0, window_bounds = array<i64: 256, 128>}, {}, {transform_indices = @transform_2, window_bounds = array<i64: 1, 256, 128>}]} {
    %c256_i32 = arith.constant 256 : i32
    %0 = arith.muli %arg1, %c256_i32 : i32
    %1 = tpu.assume_multiple %0, 256 : i32
    %c0_i32 = arith.constant 0 : i32
    %2 = arith.cmpi eq, %arg0, %c0_i32 : i32
    %c0_i32_0 = arith.constant 0 : i32
    %3 = arith.cmpi eq, %arg1, %c0_i32_0 : i32
    %4 = arith.andi %2, %3 : i1
    %5 = arith.extui %4 : i1 to i32
    %c0_i32_1 = arith.constant 0 : i32
    %6 = arith.cmpi ne, %5, %c0_i32_1 : i32
    scf.if %6 {
      tpu.enqueue_dma source(%arg3 : memref<256x256xbf16, #tpu.memory_space<any>>) target(%arg5 : memref<256x256xbf16, #tpu.memory_space<vmem>>) target_semaphore(%arg8 : memref<!tpu.dma_semaphore, #tpu.memory_space<semaphore_mem>>)
      tpu.wait_dma2 semaphore(%arg8 : memref<!tpu.dma_semaphore, #tpu.memory_space<semaphore_mem>>) src(%arg3 : memref<256x256xbf16, #tpu.memory_space<any>>) dst(%arg5 : memref<256x256xbf16, #tpu.memory_space<vmem>>)
    } else {
    }
    %7 = arith.index_cast %1 : i32 to index
    %c0 = arith.constant 0 : index
    %8 = vector.load %arg5[%7, %c0] : memref<256x256xbf16, #tpu.memory_space<vmem>>, vector<256x256xbf16>
    %c0_i32_2 = arith.constant 0 : i32
    %9 = arith.cmpi eq, %arg0, %c0_i32_2 : i32
    %10 = arith.extui %9 : i1 to i32
    %c0_i32_3 = arith.constant 0 : i32
    %11 = arith.cmpi ne, %10, %c0_i32_3 : i32
    scf.if %11 {
      %c0_6 = arith.constant 0 : index
      %c0_7 = arith.constant 0 : index
      %15 = vector.load %arg2[%c0_6, %c0_7] : memref<256x128xbf16, #tpu.memory_space<vmem>>, vector<256x128xbf16>
      %cst = arith.constant dense<0.000000e+00> : vector<256x128xf32>
      %16 = tpu.matmul %8, %15, %cst {dimension_numbers = #tpu.dot_dimension_numbers<[1], [0], [0], [1], [0, 0, 1, 1], [], []>} : vector<256x256xbf16>, vector<256x128xbf16>, vector<256x128xf32> -> vector<256x128xf32>
      %17 = vector.extract_strided_slice %16 {offsets = [0, 16], sizes = [256, 1], strides = [1, 1]} : vector<256x128xf32> to vector<256x1xf32>
      %cst_8 = arith.constant 0.000000e+00 : f32
      %18 = vector.broadcast %cst_8 : f32 to vector<256x1xf32>
      %19 = arith.cmpf ogt, %17, %18 : vector<256x1xf32>
      %cst_9 = arith.constant 1.000000e+00 : f32
      %20 = vector.broadcast %cst_9 : f32 to vector<256x1xf32>
      %21 = arith.maximumf %17, %20 : vector<256x1xf32>
      %cst_10 = arith.constant 1.000000e+00 : f32
      %22 = vector.broadcast %cst_10 : f32 to vector<256x1xf32>
      %23 = arith.divf %22, %21 : vector<256x1xf32>
      %cst_11 = arith.constant 0.000000e+00 : f32
      %24 = vector.broadcast %cst_11 : f32 to vector<256x1xf32>
      %25 = arith.select %19, %23, %24 : vector<256x1xi1>, vector<256x1xf32>
      %26 = arith.index_cast %1 : i32 to index
      %c0_12 = arith.constant 0 : index
      %27 = vector.load %arg7[%26, %c0_12] : memref<256x1xf32, #tpu.memory_space<vmem>>, vector<256x1xf32>
      tpu.vector_store %arg7[%26, %c0_12], %25 {strides = array<i32>} : memref<256x1xf32, #tpu.memory_space<vmem>>, vector<256x1xf32>,
      %28 = vector.broadcast %25 : vector<256x1xf32> to vector<256x128xf32>
      %29 = arith.mulf %16, %28 : vector<256x128xf32>
      %30 = arith.truncf %29 : vector<256x128xf32> to vector<256x128xbf16>
      %c0_13 = arith.constant 0 : index
      %c0_14 = arith.constant 0 : index
      %c0_15 = arith.constant 0 : index
      %31 = vector.load %arg4[%c0_13, %c0_14, %c0_15] : memref<1x256x128xbf16, #tpu.memory_space<vmem>>, vector<1x256x128xbf16>
      %32 = vector.shape_cast %31 : vector<1x256x128xbf16> to vector<256x128xbf16>
      %33 = vector.shape_cast %30 : vector<256x128xbf16> to vector<1x256x128xbf16>
      tpu.vector_store %arg4[%c0_13, %c0_14, %c0_15], %33 {strides = array<i32>} : memref<1x256x128xbf16, #tpu.memory_space<vmem>>, vector<1x256x128xbf16>,
      %c1_i32 = arith.constant 1 : i32
      %34 = arith.cmpi slt, %arg0, %c1_i32 : i32
      %35 = arith.extui %34 : i1 to i32
      %c0_i32_16 = arith.constant 0 : i32
      %36 = arith.cmpi ne, %35, %c0_i32_16 : i32
      scf.if %36 {
        %37 = arith.truncf %29 : vector<256x128xf32> to vector<256x128xbf16>
        %c0_17 = arith.constant 0 : index
        %38 = arith.index_cast %1 : i32 to index
        %c0_18 = arith.constant 0 : index
        %39 = vector.load %arg6[%c0_17, %38, %c0_18] : memref<1x256x128xbf16, #tpu.memory_space<vmem>>, vector<1x256x128xbf16>
        %40 = vector.shape_cast %39 : vector<1x256x128xbf16> to vector<256x128xbf16>
        %41 = vector.shape_cast %37 : vector<256x128xbf16> to vector<1x256x128xbf16>
        tpu.vector_store %arg6[%c0_17, %38, %c0_18], %41 {strides = array<i32>} : memref<1x256x128xbf16, #tpu.memory_space<vmem>>, vector<1x256x128xbf16>,
      } else {
      }
    } else {
    }
    %c0_i32_4 = arith.constant 0 : i32
    %12 = arith.cmpi sgt, %arg0, %c0_i32_4 : i32
    %13 = arith.extui %12 : i1 to i32
    %c0_i32_5 = arith.constant 0 : i32
    %14 = arith.cmpi ne, %13, %c0_i32_5 : i32
    scf.if %14 {
      %c0_6 = arith.constant 0 : index
      %c0_7 = arith.constant 0 : index
      %c0_8 = arith.constant 0 : index
      %15 = vector.load %arg6[%c0_6, %c0_7, %c0_8] : memref<1x256x128xbf16, #tpu.memory_space<vmem>>, vector<1x256x128xbf16>
      %16 = vector.shape_cast %15 : vector<1x256x128xbf16> to vector<256x128xbf16>
      %cst = arith.constant dense<0.000000e+00> : vector<256x128xf32>
      %17 = tpu.matmul %8, %16, %cst {dimension_numbers = #tpu.dot_dimension_numbers<[1], [0], [0], [1], [0, 0, 1, 1], [], []>} : vector<256x256xbf16>, vector<256x128xbf16>, vector<256x128xf32> -> vector<256x128xf32>
      %18 = arith.index_cast %1 : i32 to index
      %c0_9 = arith.constant 0 : index
      %19 = vector.load %arg7[%18, %c0_9] : memref<256x1xf32, #tpu.memory_space<vmem>>, vector<256x1xf32>
      %20 = vector.broadcast %19 : vector<256x1xf32> to vector<256x128xf32>
      %21 = arith.mulf %17, %20 : vector<256x128xf32>
      %22 = arith.truncf %21 : vector<256x128xf32> to vector<256x128xbf16>
      %c0_10 = arith.constant 0 : index
      %c0_11 = arith.constant 0 : index
      %c0_12 = arith.constant 0 : index
      %23 = vector.load %arg4[%c0_10, %c0_11, %c0_12] : memref<1x256x128xbf16, #tpu.memory_space<vmem>>, vector<1x256x128xbf16>
      %24 = vector.shape_cast %23 : vector<1x256x128xbf16> to vector<256x128xbf16>
      %25 = vector.shape_cast %22 : vector<256x128xbf16> to vector<1x256x128xbf16>
      tpu.vector_store %arg4[%c0_10, %c0_11, %c0_12], %25 {strides = array<i32>} : memref<1x256x128xbf16, #tpu.memory_space<vmem>>, vector<1x256x128xbf16>,
      %c1_i32 = arith.constant 1 : i32
      %26 = arith.cmpi slt, %arg0, %c1_i32 : i32
      %27 = arith.extui %26 : i1 to i32
      %c0_i32_13 = arith.constant 0 : i32
      %28 = arith.cmpi ne, %27, %c0_i32_13 : i32
      scf.if %28 {
        %29 = arith.truncf %21 : vector<256x128xf32> to vector<256x128xbf16>
        %c0_14 = arith.constant 0 : index
        %30 = arith.index_cast %1 : i32 to index
        %c0_15 = arith.constant 0 : index
        %31 = vector.load %arg6[%c0_14, %30, %c0_15] : memref<1x256x128xbf16, #tpu.memory_space<vmem>>, vector<1x256x128xbf16>
        %32 = vector.shape_cast %31 : vector<1x256x128xbf16> to vector<256x128xbf16>
        %33 = vector.shape_cast %29 : vector<256x128xbf16> to vector<1x256x128xbf16>
        tpu.vector_store %arg6[%c0_14, %30, %c0_15], %33 {strides = array<i32>} : memref<1x256x128xbf16, #tpu.memory_space<vmem>>, vector<1x256x128xbf16>,
      } else {
      }
    } else {
    }
    return
  }
  func.func @transform_0(%arg0: i32, %arg1: i32) -> (i32, i32) {
    %c0_i32 = arith.constant 0 : i32
    %c0_i32_0 = arith.constant 0 : i32
    %c0_i32_1 = arith.constant 0 : i32
    return %c0_i32, %c0_i32_0 : i32, i32
  }
  func.func @transform_2(%arg0: i32, %arg1: i32) -> (i32, i32, i32) {
    %c0_i32 = arith.constant 0 : i32
    %c0_i32_0 = arith.constant 0 : i32
    return %arg0, %arg1, %c0_i32 : i32, i32, i32
  }
}

</mosaic_0001>

<llo_original>
// kernel: gin_noparam_forward.1
$region0: #{gin_noparam_forward.1}
  #allocation0 [shape = 'u32[]', space=smem, size = 0x4, offset = 0x4, fixed_abs, tag = 'smem constant byte address 0x4 - core index']
  #allocation1 [shape = 'u32[72,128]{1,0:T(1,128)}', space=vmem, size = 0x9000, scoped, tag = 'internal scratch']
  #allocation2 [shape = 'bf16[256,256]{1,0:T(8,128)(2,1)}', space=vmem, size = 0x20000, scoped, tag = 'scratch operand']
  #allocation3 [shape = 'bf16[1,256,128]{2,1,0:T(8,128)(2,1)}', space=vmem, size = 0x10000, scoped, tag = 'scratch operand']
  #allocation4 [shape = 'f32[256,1]{1,0:T(8,128)}', space=vmem, size = 0x20000, scoped, tag = 'scratch operand']
  #allocation5 [shape = 's32[1]{0}', space=sflag, size = 0x4, scoped, tag = 'scratch operand']
  #allocation6 [shape = 's32[]', space=sflag, size = 0x4, offset = 0, fixed_abs, tag = 'sflag constant byte address 0x0 - dummy sync flag']
  %s0 = inlined_call_operand.vmem [shape: bf16[256,128], index: 0, kind: input, shape index: {}]
  %s1 = inlined_call_operand.vmem [shape: bf16[256,256], index: 1, kind: input, shape index: {}]
  %s2 = inlined_call_operand.vmem [shape: bf16[2,256,128], index: 2, kind: output, shape index: {}]
  %s3 = sld [smem:[#allocation0]]
  $region76: #{gin_noparam_forward.1} parent=0
    _
  %s5 = ssub.s32 1, %s3
  %s6 = scalar_select 0, %s5, %s3
  loop: start=0, step=1, limit=4
  $region2: #{gin_noparam_forward.1} parent=0 // loop_pre_header
    _
  $region3: #{gin_noparam_forward.1} parent=0 // loop_header
    %s8 = sphi 0, %s12
    %p9 = scmp.ge.s32.totalorder %s8, 4
    %s15 = sphi 0, %s27
    %s16 = sphi 0, %s23
    %s17 = sphi 0, %s15
    %s18 = sphi 0, %s16
    %s19 = sphi 0, %s17
    %s20 = sphi 0, %s18
    %s28 = sphi 0, %s28
    %s30 = sphi 0, %s28
    %s31 = sphi 0, %s30
    %s45 = sphi 0, %s31
    %s53 = sphi 0, %s55
    %s56 = sphi 0, %s53
    %s57 = sphi 0, %s56
    %s73 = sphi 0, %s57
  $region4: #{gin_noparam_forward.1} parent=0 // loop_header_branch
    %11 = sbr.rel (%p9) target = $region8
  $region5: #{gin_noparam_forward.1} parent=0 // loop_body
    %s13 = ssub.s32 %s8, 1
    %s14 = ssub.s32 %s8, 2
    %s21 = sadd.s32 1, %s16
    %p22 = scmp.ge.s32.totalorder %s21, 1
    %s23 = scalar_select %p22, 0, %s21
    %s24 = sadd.s32 1, %s15
    %s25 = scalar_select %p22, %s24, %s15
    %p26 = scmp.ge.s32.totalorder %s25, 2
    %s27 = scalar_select %p26, 0, %s25
    %s29 = sadd.s32 %s28, 1
    %p32 = scmp.eq.s32.totalorder %s8, 1
    %p33 = scmp.ne.s32.totalorder %s28, %s30
    %p34 = scmp.eq.s32.totalorder %s8, 0
    %p35 = por %p33, %p34
    %p36 = scmp.ne.s32.totalorder %s28, %s30
    %p37 = scmp.eq.s32.totalorder %s13, 1
    %p38 = por %p36, %p37
    %p39 = scmp.ne.s32.totalorder %s30, %s31
    %p40 = scmp.eq.s32.totalorder %s13, 0
    %p41 = por %p39, %p40
    %p42 = scmp.ne.s32.totalorder %s30, %s31
    %p43 = scmp.eq.s32.totalorder %s14, 1
    %p44 = por %p42, %p43
    %p46 = scmp.ne.s32.totalorder %s31, %s45
    %p47 = scmp.eq.s32.totalorder %s14, 0
    %p48 = por %p46, %p47
    %s49 = ssub.s32 %s15, %s27
    %s50 = ssub.s32 %s16, %s23
    %s51 = sor.u32 %s49, %s50
    %p52 = scmp.eq.s32.totalorder %s51, 0
    %s54 = sadd.s32 %s53, 1
    %s55 = scalar_select %p52, %s53, %s54
    %p58 = pneg %p52
    %p59 = scmp.eq.s32.totalorder %s8, 1
    %p60 = por %p58, %p59
    %p61 = scmp.ne.s32.totalorder %s53, %s56
    %p62 = scmp.eq.s32.totalorder %s8, 0
    %p63 = por %p61, %p62
    %p64 = scmp.ne.s32.totalorder %s53, %s56
    %p65 = scmp.eq.s32.totalorder %s13, 1
    %p66 = por %p64, %p65
    %p67 = scmp.ne.s32.totalorder %s56, %s57
    %p68 = scmp.eq.s32.totalorder %s13, 0
    %p69 = por %p67, %p68
    %p70 = scmp.ne.s32.totalorder %s56, %s57
    %p71 = scmp.eq.s32.totalorder %s14, 1
    %p72 = por %p70, %p71
    %p74 = scmp.ne.s32.totalorder %s57, %s73
    %p75 = scmp.eq.s32.totalorder %s14, 0
    %p76 = por %p74, %p75
    %p77 = scmp.le.s32.totalorder 1, %s8
    %p78 = scmp.lt.s32.totalorder %s8, 3
    %p79 = pnand %p77, %p78
    %p80 = pneg %p79
    // Predicated region
    $region9: #{gin_noparam_forward.1} parent=5 // pred_check
      _
    $region10: #{gin_noparam_forward.1} parent=5 // pred_check_branch
      %82 = sbr.rel (%p79) target = $region12
    $region11: #{gin_noparam_forward.1} parent=5 // pred_region
      %s83 = ssub.s32 %s8, 1
      // Predicated region
      $region13: #{gin_noparam_forward.1} parent=11 // pred_check
        %p84 = pneg %p41
      $region14: #{gin_noparam_forward.1} parent=11 // pred_check_branch
        %86 = sbr.rel (%p84) target = $region16
      $region15: #{gin_noparam_forward.1} parent=11 // pred_region
        _
      $region16: #{gin_noparam_forward.1} parent=11 // pred_fallthru
        _
    $region12: #{gin_noparam_forward.1} parent=5 // pred_fallthru
      _
    %p87 = scmp.lt.s32.totalorder %s8, 2
    // Predicated region
    $region17: #{gin_noparam_forward.1} parent=5 // pred_check
      %p88 = pneg %p87
    $region18: #{gin_noparam_forward.1} parent=5 // pred_check_branch
      %90 = sbr.rel (%p88) target = $region20
    $region19: #{gin_noparam_forward.1} parent=5 // pred_region
      _
    $region20: #{gin_noparam_forward.1} parent=5 // pred_fallthru
      _
    %p91 = scmp.le.s32.totalorder 1, %s8
    %p92 = scmp.lt.s32.totalorder %s8, 3
    %p93 = pnand %p91, %p92
    %p94 = pneg %p93
    // Predicated region
    $region21: #{gin_noparam_forward.1} parent=5 // pred_check
      _
    $region22: #{gin_noparam_forward.1} parent=5 // pred_check_branch
      %96 = sbr.rel (%p93) target = $region24
    $region23: #{gin_noparam_forward.1} parent=5 // pred_region
      %s97 = ssub.s32 %s8, 1
      %p98 = pneg %p41
      %p99 = pneg %p38
      %p100 = pneg %p69
      %p101 = pneg %p66
      %s102 = smul.u32 32, %s18
      %p103 = scmp.lt.s32.totalorder %s17, 1
      %s104 = scalar_select %p103, %s17, 1
      %p105 = scmp.lt.s32.totalorder %s102, 31
      %s106 = scalar_select %p105, %s102, 31
      %s107 = smul.addr %s104, 32
      %s108 = sadd.s32 %s106, %s107
      %s109 = smul.addr %s108, 4
      %s110 = scalar_lea.vmem %s2, %s109
      %s111 = smul.u32 32, %s18
      %p112 = scmp.lt.s32.totalorder %s17, 1
      %s113 = scalar_select %p112, %s17, 1
      %p114 = scmp.lt.s32.totalorder %s111, 31
      %s115 = scalar_select %p114, %s111, 31
      %s116 = smul.addr %s113, 32
      %s117 = sadd.s32 %s115, %s116
      %s118 = smul.addr %s117, 4
      %s119 = scalar_lea.vmem %s2, %s118
      %s120 = smul.u32 32, %s18
      %s121 = smul.u32 %s18, 256
      %p122 = scmp.eq.s32.totalorder %s17, 0
      %p123 = scmp.eq.s32.totalorder %s18, 0
      %p124 = pnand %p122, %p123
      %p125 = pneg %p124
      // Predicated region
      $region25: #{gin_noparam_forward.1} parent=23 // pred_check
        _
      $region26: #{gin_noparam_forward.1} parent=23 // pred_check_branch
        %127 = sbr.rel (%p124) target = $region28
      $region27: #{gin_noparam_forward.1} parent=23 // pred_region
        // Predicated region
        $region29: #{gin_noparam_forward.1} parent=27 // pred_check
          _
        $region30: #{gin_noparam_forward.1} parent=27 // pred_check_branch
          %129 = sbr.rel (0) target = $region32
        $region31: #{gin_noparam_forward.1} parent=27 // pred_region
          loop: start=0, step=1, limit=1
          $region33: #{gin_noparam_forward.1} parent=31 // loop_pre_header
            _
          $region34: #{gin_noparam_forward.1} parent=31 // loop_header
            %s131 = sphi 0, %s135
            %p132 = scmp.ge.s32.totalorder %s131, 1
            %s136 = sphi %s1, %s1
            %s137 = sphi [#allocation2], [#allocation2]
          $region35: #{gin_noparam_forward.1} parent=31 // loop_header_branch
            %134 = sbr.rel (%p132) target = $region39
          $region36: #{gin_noparam_forward.1} parent=31 // loop_body
            %v138 = vld [vmem:[%s136] sm:$0xff]
            %139 = vst [vmem:[%s137] sm:$0xff] %v138
            %v140 = vld [vmem:[%s136 + $0x8] sm:$0xff]
            %141 = vst [vmem:[%s137 + $0x8] sm:$0xff] %v140
            %v142 = vld [vmem:[%s136 + $0x10] sm:$0xff]
            %143 = vst [vmem:[%s137 + $0x10] sm:$0xff] %v142
            %v144 = vld [vmem:[%s136 + $0x18] sm:$0xff]
            %145 = vst [vmem:[%s137 + $0x18] sm:$0xff] %v144
            %v146 = vld [vmem:[%s136 + $0x20] sm:$0xff]
            %147 = vst [vmem:[%s137 + $0x20] sm:$0xff] %v146
            %v148 = vld [vmem:[%s136 + $0x28] sm:$0xff]
            %149 = vst [vmem:[%s137 + $0x28] sm:$0xff] %v148
            %v150 = vld [vmem:[%s136 + $0x30] sm:$0xff]
            %151 = vst [vmem:[%s137 + $0x30] sm:$0xff] %v150
            %v152 = vld [vmem:[%s136 + $0x38] sm:$0xff]
            %153 = vst [vmem:[%s137 + $0x38] sm:$0xff] %v152
            %v154 = vld [vmem:[%s136 + $0x40] sm:$0xff]
            %155 = vst [vmem:[%s137 + $0x40] sm:$0xff] %v154
            %v156 = vld [vmem:[%s136 + $0x48] sm:$0xff]
            %157 = vst [vmem:[%s137 + $0x48] sm:$0xff] %v156
            %v158 = vld [vmem:[%s136 + $0x50] sm:$0xff]
            %159 = vst [vmem:[%s137 + $0x50] sm:$0xff] %v158
            %v160 = vld [vmem:[%s136 + $0x58] sm:$0xff]
            %161 = vst [vmem:[%s137 + $0x58] sm:$0xff] %v160
            %v162 = vld [vmem:[%s136 + $0x60] sm:$0xff]
            %163 = vst [vmem:[%s137 + $0x60] sm:$0xff] %v162
            %v164 = vld [vmem:[%s136 + $0x68] sm:$0xff]
            %165 = vst [vmem:[%s137 + $0x68] sm:$0xff] %v164
            %v166 = vld [vmem:[%s136 + $0x70] sm:$0xff]
            %167 = vst [vmem:[%s137 + $0x70] sm:$0xff] %v166
            %v168 = vld [vmem:[%s136 + $0x78] sm:$0xff]
            %169 = vst [vmem:[%s137 + $0x78] sm:$0xff] %v168
            %v170 = vld [vmem:[%s136 + $0x80] sm:$0xff]
            %171 = vst [vmem:[%s137 + $0x80] sm:$0xff] %v170
            %v172 = vld [vmem:[%s136 + $0x88] sm:$0xff]
            %173 = vst [vmem:[%s137 + $0x88] sm:$0xff] %v172
            %v174 = vld [vmem:[%s136 + $0x90] sm:$0xff]
            %175 = vst [vmem:[%s137 + $0x90] sm:$0xff] %v174
            %v176 = vld [vmem:[%s136 + $0x98] sm:$0xff]
            %177 = vst [vmem:[%s137 + $0x98] sm:$0xff] %v176
            %v178 = vld [vmem:[%s136 + $0xa0] sm:$0xff]
            %179 = vst [vmem:[%s137 + $0xa0] sm:$0xff] %v178
            %v180 = vld [vmem:[%s136 + $0xa8] sm:$0xff]
            %181 = vst [vmem:[%s137 + $0xa8] sm:$0xff] %v180
            %v182 = vld [vmem:[%s136 + $0xb0] sm:$0xff]
            %183 = vst [vmem:[%s137 + $0xb0] sm:$0xff] %v182
            %v184 = vld [vmem:[%s136 + $0xb8] sm:$0xff]
            %185 = vst [vmem:[%s137 + $0xb8] sm:$0xff] %v184
            %v186 = vld [vmem:[%s136 + $0xc0] sm:$0xff]
            %187 = vst [vmem:[%s137 + $0xc0] sm:$0xff] %v186
            %v188 = vld [vmem:[%s136 + $0xc8] sm:$0xff]
            %189 = vst [vmem:[%s137 + $0xc8] sm:$0xff] %v188
            %v190 = vld [vmem:[%s136 + $0xd0] sm:$0xff]
            %191 = vst [vmem:[%s137 + $0xd0] sm:$0xff] %v190
            %v192 = vld [vmem:[%s136 + $0xd8] sm:$0xff]
            %193 = vst [vmem:[%s137 + $0xd8] sm:$0xff] %v192
            %v194 = vld [vmem:[%s136 + $0xe0] sm:$0xff]
            %195 = vst [vmem:[%s137 + $0xe0] sm:$0xff] %v194
            %v196 = vld [vmem:[%s136 + $0xe8] sm:$0xff]
            %197 = vst [vmem:[%s137 + $0xe8] sm:$0xff] %v196
            %v198 = vld [vmem:[%s136 + $0xf0] sm:$0xff]
            %199 = vst [vmem:[%s137 + $0xf0] sm:$0xff] %v198
            %v200 = vld [vmem:[%s136 + $0xf8] sm:$0xff]
            %201 = vst [vmem:[%s137 + $0xf8] sm:$0xff] %v200
          $region37: #{gin_noparam_forward.1} parent=31 // loop_footer
            %s135 = sadd.s32 1, %s131
          $region38: #{gin_noparam_forward.1} parent=31 // loop_footer_branch
            %130 = sbr.rel target = $region34
          $region39: #{gin_noparam_forward.1} parent=31 // loop_exit
            _
        $region32: #{gin_noparam_forward.1} parent=27 // pred_fallthru
          _
        // Predicated region
        $region40: #{gin_noparam_forward.1} parent=27 // pred_check
          _
        $region41: #{gin_noparam_forward.1} parent=27 // pred_check_branch
          %203 = sbr.rel target = $region43
        $region42: #{gin_noparam_forward.1} parent=27 // pred_region
          _
        $region43: #{gin_noparam_forward.1} parent=27 // pred_fallthru
          _
        // Predicated region
        $region44: #{gin_noparam_forward.1} parent=27 // pred_check
          _
        $region45: #{gin_noparam_forward.1} parent=27 // pred_check_branch
          %206 = sbr.rel (0) target = $region47
        $region46: #{gin_noparam_forward.1} parent=27 // pred_region
          %207 = vsyncadd [#allocation5], 4096
        $region47: #{gin_noparam_forward.1} parent=27 // pred_fallthru
          _
        %s208 = smul.u32 4, 32
        %s209 = smul.u32 %s208, 2
        %s210 = sshll.u32 %s209, 4
        %211 = dma.done [#allocation5], %s210
      $region28: #{gin_noparam_forward.1} parent=23 // pred_fallthru
        _
      %s212 = sshra.s32 %s121, 3
      %s213 = sand.u32 %s121, 7
      %s214 = smul.u32 %s212, 2
      %s215 = smul.addr %s214, 4
      %s216 = scalar_lea.vmem [#allocation2], %s215
      %v217 = vld [vmem:[%s216] sm:$0xff]
      %v218 = vld [vmem:[%s216 + $0x8] sm:$0xff]
      %v219 = vld [vmem:[%s216 + $0x10] sm:$0xff]
      %v220 = vld [vmem:[%s216 + $0x18] sm:$0xff]
      %v221 = vld [vmem:[%s216 + $0x20] sm:$0xff]
      %v222 = vld [vmem:[%s216 + $0x28] sm:$0xff]
      %v223 = vld [vmem:[%s216 + $0x30] sm:$0xff]
      %v224 = vld [vmem:[%s216 + $0x38] sm:$0xff]
      %v225 = vld [vmem:[%s216 + $0x40] sm:$0xff]
      %v226 = vld [vmem:[%s216 + $0x48] sm:$0xff]
      %v227 = vld [vmem:[%s216 + $0x50] sm:$0xff]
      %v228 = vld [vmem:[%s216 + $0x58] sm:$0xff]
      %v229 = vld [vmem:[%s216 + $0x60] sm:$0xff]
      %v230 = vld [vmem:[%s216 + $0x68] sm:$0xff]
      %v231 = vld [vmem:[%s216 + $0x70] sm:$0xff]
      %v232 = vld [vmem:[%s216 + $0x78] sm:$0xff]
      %v233 = vld [vmem:[%s216 + $0x80] sm:$0xff]
      %v234 = vld [vmem:[%s216 + $0x88] sm:$0xff]
      %v235 = vld [vmem:[%s216 + $0x90] sm:$0xff]
      %v236 = vld [vmem:[%s216 + $0x98] sm:$0xff]
      %v237 = vld [vmem:[%s216 + $0xa0] sm:$0xff]
      %v238 = vld [vmem:[%s216 + $0xa8] sm:$0xff]
      %v239 = vld [vmem:[%s216 + $0xb0] sm:$0xff]
      %v240 = vld [vmem:[%s216 + $0xb8] sm:$0xff]
      %v241 = vld [vmem:[%s216 + $0xc0] sm:$0xff]
      %v242 = vld [vmem:[%s216 + $0xc8] sm:$0xff]
      %v243 = vld [vmem:[%s216 + $0xd0] sm:$0xff]
      %v244 = vld [vmem:[%s216 + $0xd8] sm:$0xff]
      %v245 = vld [vmem:[%s216 + $0xe0] sm:$0xff]
      %v246 = vld [vmem:[%s216 + $0xe8] sm:$0xff]
      %v247 = vld [vmem:[%s216 + $0xf0] sm:$0xff]
      %v248 = vld [vmem:[%s216 + $0xf8] sm:$0xff]
      // Predicated region
      $region48: #{gin_noparam_forward.1} parent=23 // pred_check
        %p249 = pneg %p122
      $region49: #{gin_noparam_forward.1} parent=23 // pred_check_branch
        %251 = sbr.rel (%p249) target = $region51
      $region50: #{gin_noparam_forward.1} parent=23 // pred_region
        %v252 = vld [vmem:[%s0] sm:$0xf]
        %v253 = vld [vmem:[%s0 + $0x4] sm:$0xf]
        %v254 = vld [vmem:[%s0 + $0x8] sm:$0xf]
        %v255 = vld [vmem:[%s0 + $0xc] sm:$0xf]
        %v256 = vld [vmem:[%s0 + $0x10] sm:$0xf]
        %v257 = vld [vmem:[%s0 + $0x14] sm:$0xf]
        %v258 = vld [vmem:[%s0 + $0x18] sm:$0xf]
        %v259 = vld [vmem:[%s0 + $0x1c] sm:$0xf]
        %v260 = vld [vmem:[%s0 + $0x20] sm:$0xf]
        %v261 = vld [vmem:[%s0 + $0x24] sm:$0xf]
        %v262 = vld [vmem:[%s0 + $0x28] sm:$0xf]
        %v263 = vld [vmem:[%s0 + $0x2c] sm:$0xf]
        %v264 = vld [vmem:[%s0 + $0x30] sm:$0xf]
        %v265 = vld [vmem:[%s0 + $0x34] sm:$0xf]
        %v266 = vld [vmem:[%s0 + $0x38] sm:$0xf]
        %v267 = vld [vmem:[%s0 + $0x3c] sm:$0xf]
        %v268 = vld [vmem:[%s0 + $0x40] sm:$0xf]
        %v269 = vld [vmem:[%s0 + $0x44] sm:$0xf]
        %v270 = vld [vmem:[%s0 + $0x48] sm:$0xf]
        %v271 = vld [vmem:[%s0 + $0x4c] sm:$0xf]
        %v272 = vld [vmem:[%s0 + $0x50] sm:$0xf]
        %v273 = vld [vmem:[%s0 + $0x54] sm:$0xf]
        %v274 = vld [vmem:[%s0 + $0x58] sm:$0xf]
        %v275 = vld [vmem:[%s0 + $0x5c] sm:$0xf]
        %v276 = vld [vmem:[%s0 + $0x60] sm:$0xf]
        %v277 = vld [vmem:[%s0 + $0x64] sm:$0xf]
        %v278 = vld [vmem:[%s0 + $0x68] sm:$0xf]
        %v279 = vld [vmem:[%s0 + $0x6c] sm:$0xf]
        %v280 = vld [vmem:[%s0 + $0x70] sm:$0xf]
        %v281 = vld [vmem:[%s0 + $0x74] sm:$0xf]
        %v282 = vld [vmem:[%s0 + $0x78] sm:$0xf]
        %v283 = vld [vmem:[%s0 + $0x7c] sm:$0xf]
        %v316 = vunpack.c.l.b16 %v217
        %v317 = vunpack.c.h.b16 %v217
        %v318 = vunpack.c.l.b16 %v218
        %v319 = vunpack.c.h.b16 %v218
        %v320 = vunpack.c.l.b16 %v219
        %v321 = vunpack.c.h.b16 %v219
        %v322 = vunpack.c.l.b16 %v220
        %v323 = vunpack.c.h.b16 %v220
        %v324 = vunpack.c.l.b16 %v221
        %v325 = vunpack.c.h.b16 %v221
        %v326 = vunpack.c.l.b16 %v222
        %v327 = vunpack.c.h.b16 %v222
        %v328 = vunpack.c.l.b16 %v223
        %v329 = vunpack.c.h.b16 %v223
        %v330 = vunpack.c.l.b16 %v224
        %v331 = vunpack.c.h.b16 %v224
        %v332 = vunpack.c.l.b16 %v225
        %v333 = vunpack.c.h.b16 %v225
        %v334 = vunpack.c.l.b16 %v226
        %v335 = vunpack.c.h.b16 %v226
        %v336 = vunpack.c.l.b16 %v227
        %v337 = vunpack.c.h.b16 %v227
        %v338 = vunpack.c.l.b16 %v228
        %v339 = vunpack.c.h.b16 %v228
        %v340 = vunpack.c.l.b16 %v229
        %v341 = vunpack.c.h.b16 %v229
        %v342 = vunpack.c.l.b16 %v230
        %v343 = vunpack.c.h.b16 %v230
        %v344 = vunpack.c.l.b16 %v231
        %v345 = vunpack.c.h.b16 %v231
        %v346 = vunpack.c.l.b16 %v232
        %v347 = vunpack.c.h.b16 %v232
        %v348 = vunpack.c.l.b16 %v233
        %v349 = vunpack.c.h.b16 %v233
        %v350 = vunpack.c.l.b16 %v234
        %v351 = vunpack.c.h.b16 %v234
        %v352 = vunpack.c.l.b16 %v235
        %v353 = vunpack.c.h.b16 %v235
        %v354 = vunpack.c.l.b16 %v236
        %v355 = vunpack.c.h.b16 %v236
        %v356 = vunpack.c.l.b16 %v237
        %v357 = vunpack.c.h.b16 %v237
        %v358 = vunpack.c.l.b16 %v238
        %v359 = vunpack.c.h.b16 %v238
        %v360 = vunpack.c.l.b16 %v239
        %v361 = vunpack.c.h.b16 %v239
        %v362 = vunpack.c.l.b16 %v240
        %v363 = vunpack.c.h.b16 %v240
        %v364 = vunpack.c.l.b16 %v241
        %v365 = vunpack.c.h.b16 %v241
        %v366 = vunpack.c.l.b16 %v242
        %v367 = vunpack.c.h.b16 %v242
        %v368 = vunpack.c.l.b16 %v243
        %v369 = vunpack.c.h.b16 %v243
        %v370 = vunpack.c.l.b16 %v244
        %v371 = vunpack.c.h.b16 %v244
        %v372 = vunpack.c.l.b16 %v245
        %v373 = vunpack.c.h.b16 %v245
        %v374 = vunpack.c.l.b16 %v246
        %v375 = vunpack.c.h.b16 %v246
        %v376 = vunpack.c.l.b16 %v247
        %v377 = vunpack.c.h.b16 %v247
        %v378 = vunpack.c.l.b16 %v248
        %v379 = vunpack.c.h.b16 %v248
        %v380 = vpack.c.b16 %v318, %v316
        %v381 = vpack.c.b16 %v319, %v317
        %v382 = vpack.c.b16 %v322, %v320
        %v383 = vpack.c.b16 %v323, %v321
        %v384 = vpack.c.b16 %v326, %v324
        %v385 = vpack.c.b16 %v327, %v325
        %v386 = vpack.c.b16 %v330, %v328
        %v387 = vpack.c.b16 %v331, %v329
        %v388 = vpack.c.b16 %v334, %v332
        %v389 = vpack.c.b16 %v335, %v333
        %v390 = vpack.c.b16 %v338, %v336
        %v391 = vpack.c.b16 %v339, %v337
        %v392 = vpack.c.b16 %v342, %v340
        %v393 = vpack.c.b16 %v343, %v341
        %v394 = vpack.c.b16 %v346, %v344
        %v395 = vpack.c.b16 %v347, %v345
        %v396 = vpack.c.b16 %v350, %v348
        %v397 = vpack.c.b16 %v351, %v349
        %v398 = vpack.c.b16 %v354, %v352
        %v399 = vpack.c.b16 %v355, %v353
        %v400 = vpack.c.b16 %v358, %v356
        %v401 = vpack.c.b16 %v359, %v357
        %v402 = vpack.c.b16 %v362, %v360
        %v403 = vpack.c.b16 %v363, %v361
        %v404 = vpack.c.b16 %v366, %v364
        %v405 = vpack.c.b16 %v367, %v365
        %v406 = vpack.c.b16 %v370, %v368
        %v407 = vpack.c.b16 %v371, %v369
        %v408 = vpack.c.b16 %v374, %v372
        %v409 = vpack.c.b16 %v375, %v373
        %v410 = vpack.c.b16 %v378, %v376
        %v411 = vpack.c.b16 %v379, %v377
        %v476 = vunpack.c.l.b16 %v252
        %v477 = vunpack.c.l.b16 %v253
        %v478 = vunpack.c.l.b16 %v254
        %v479 = vunpack.c.l.b16 %v255
        %v480 = vunpack.c.l.b16 %v256
        %v481 = vunpack.c.l.b16 %v257
        %v482 = vunpack.c.l.b16 %v258
        %v483 = vunpack.c.l.b16 %v259
        %v484 = vunpack.c.l.b16 %v260
        %v485 = vunpack.c.l.b16 %v261
        %v486 = vunpack.c.l.b16 %v262
        %v487 = vunpack.c.l.b16 %v263
        %v488 = vunpack.c.l.b16 %v264
        %v489 = vunpack.c.l.b16 %v265
        %v490 = vunpack.c.l.b16 %v266
        %v491 = vunpack.c.l.b16 %v267
        %v492 = vunpack.c.l.b16 %v268
        %v493 = vunpack.c.l.b16 %v269
        %v494 = vunpack.c.l.b16 %v270
        %v495 = vunpack.c.l.b16 %v271
        %v496 = vunpack.c.l.b16 %v272
        %v497 = vunpack.c.l.b16 %v273
        %v498 = vunpack.c.l.b16 %v274
        %v499 = vunpack.c.l.b16 %v275
        %v500 = vunpack.c.l.b16 %v276
        %v501 = vunpack.c.l.b16 %v277
        %v502 = vunpack.c.l.b16 %v278
        %v503 = vunpack.c.l.b16 %v279
        %v504 = vunpack.c.l.b16 %v280
        %v505 = vunpack.c.l.b16 %v281
        %v506 = vunpack.c.l.b16 %v282
        %v507 = vunpack.c.l.b16 %v283
        %v508 = vpack.c.b16 %v477, %v476
        %v509 = vpack.c.b16 %v479, %v478
        %v510 = vpack.c.b16 %v481, %v480
        %v511 = vpack.c.b16 %v483, %v482
        %v512 = vpack.c.b16 %v485, %v484
        %v513 = vpack.c.b16 %v487, %v486
        %v514 = vpack.c.b16 %v489, %v488
        %v515 = vpack.c.b16 %v491, %v490
        %v516 = vpack.c.b16 %v493, %v492
        %v517 = vpack.c.b16 %v495, %v494
        %v518 = vpack.c.b16 %v497, %v496
        %v519 = vpack.c.b16 %v499, %v498
        %v520 = vpack.c.b16 %v501, %v500
        %v521 = vpack.c.b16 %v503, %v502
        %v522 = vpack.c.b16 %v505, %v504
        %v523 = vpack.c.b16 %v507, %v506
        %540 = vmatpush.bf16.msra.mxu0 %v515
        %541 = vmatpush.bf16.msra.mxu0 %v514
        %542 = vmatpush.bf16.msra.mxu0 %v513
        %543 = vmatpush.bf16.msra.mxu0 %v512
        %544 = vmatpush.bf16.msra.mxu0 %v511
        %545 = vmatpush.bf16.msra.mxu0 %v510
        %546 = vmatpush.bf16.msra.mxu0 %v509
        %547 = vmatpush.bf16.msra.mxu0 %v508
        %548 = vmatmul.bf16.gmra.mxu0 %v380
        %v549 = vpop.f32.mrf.mxu0
        %v550 = vadd.f32 0.0, %v549
        %v551 = vpop.f32.mrf.mxu0
        %v552 = vadd.f32 0.0, %v551
        %553 = vmatmul.bf16.gmra.mxu0 %v382
        %v554 = vpop.f32.mrf.mxu0
        %v555 = vadd.f32 0.0, %v554
        %v556 = vpop.f32.mrf.mxu0
        %v557 = vadd.f32 0.0, %v556
        %558 = vmatmul.bf16.gmra.mxu0 %v384
        %v559 = vpop.f32.mrf.mxu0
        %v560 = vadd.f32 0.0, %v559
        %v561 = vpop.f32.mrf.mxu0
        %v562 = vadd.f32 0.0, %v561
        %563 = vmatmul.bf16.gmra.mxu0 %v386
        %v564 = vpop.f32.mrf.mxu0
        %v565 = vadd.f32 0.0, %v564
        %v566 = vpop.f32.mrf.mxu0
        %v567 = vadd.f32 0.0, %v566
        %568 = vmatmul.bf16.gmra.mxu0 %v388
        %v569 = vpop.f32.mrf.mxu0
        %v570 = vadd.f32 0.0, %v569
        %v571 = vpop.f32.mrf.mxu0
        %v572 = vadd.f32 0.0, %v571
        %573 = vmatmul.bf16.gmra.mxu0 %v390
        %v574 = vpop.f32.mrf.mxu0
        %v575 = vadd.f32 0.0, %v574
        %v576 = vpop.f32.mrf.mxu0
        %v577 = vadd.f32 0.0, %v576
        %578 = vmatmul.bf16.gmra.mxu0 %v392
        %v579 = vpop.f32.mrf.mxu0
        %v580 = vadd.f32 0.0, %v579
        %v581 = vpop.f32.mrf.mxu0
        %v582 = vadd.f32 0.0, %v581
        %583 = vmatmul.bf16.gmra.mxu0 %v394
        %v584 = vpop.f32.mrf.mxu0
        %v585 = vadd.f32 0.0, %v584
        %v586 = vpop.f32.mrf.mxu0
        %v587 = vadd.f32 0.0, %v586
        %588 = vmatmul.bf16.gmra.mxu0 %v396
        %v589 = vpop.f32.mrf.mxu0
        %v590 = vadd.f32 0.0, %v589
        %v591 = vpop.f32.mrf.mxu0
        %v592 = vadd.f32 0.0, %v591
        %593 = vmatmul.bf16.gmra.mxu0 %v398
        %v594 = vpop.f32.mrf.mxu0
        %v595 = vadd.f32 0.0, %v594
        %v596 = vpop.f32.mrf.mxu0
        %v597 = vadd.f32 0.0, %v596
        %598 = vmatmul.bf16.gmra.mxu0 %v400
        %v599 = vpop.f32.mrf.mxu0
        %v600 = vadd.f32 0.0, %v599
        %v601 = vpop.f32.mrf.mxu0
        %v602 = vadd.f32 0.0, %v601
        %603 = vmatmul.bf16.gmra.mxu0 %v402
        %v604 = vpop.f32.mrf.mxu0
        %v605 = vadd.f32 0.0, %v604
        %v606 = vpop.f32.mrf.mxu0
        %v607 = vadd.f32 0.0, %v606
        %608 = vmatmul.bf16.gmra.mxu0 %v404
        %v609 = vpop.f32.mrf.mxu0
        %v610 = vadd.f32 0.0, %v609
        %v611 = vpop.f32.mrf.mxu0
        %v612 = vadd.f32 0.0, %v611
        %613 = vmatmul.bf16.gmra.mxu0 %v406
        %v614 = vpop.f32.mrf.mxu0
        %v615 = vadd.f32 0.0, %v614
        %v616 = vpop.f32.mrf.mxu0
        %v617 = vadd.f32 0.0, %v616
        %618 = vmatmul.bf16.gmra.mxu0 %v408
        %v619 = vpop.f32.mrf.mxu0
        %v620 = vadd.f32 0.0, %v619
        %v621 = vpop.f32.mrf.mxu0
        %v622 = vadd.f32 0.0, %v621
        %623 = vmatmul.bf16.gmra.mxu0 %v410
        %v624 = vpop.f32.mrf.mxu0
        %v625 = vadd.f32 0.0, %v624
        %v626 = vpop.f32.mrf.mxu0
        %v627 = vadd.f32 0.0, %v626
        %628 = vdwg.mxu0
        %629 = vmatpush.bf16.msra.mxu0 %v523
        %630 = vmatpush.bf16.msra.mxu0 %v522
        %631 = vmatpush.bf16.msra.mxu0 %v521
        %632 = vmatpush.bf16.msra.mxu0 %v520
        %633 = vmatpush.bf16.msra.mxu0 %v519
        %634 = vmatpush.bf16.msra.mxu0 %v518
        %635 = vmatpush.bf16.msra.mxu0 %v517
        %636 = vmatpush.bf16.msra.mxu0 %v516
        %637 = vmatmul.bf16.gmra.mxu0 %v381
        %v638 = vpop.f32.mrf.mxu0
        %v639 = vadd.f32 %v550, %v638
        %v640 = vpop.f32.mrf.mxu0
        %v641 = vadd.f32 %v552, %v640
        %642 = vmatmul.bf16.gmra.mxu0 %v383
        %v643 = vpop.f32.mrf.mxu0
        %v644 = vadd.f32 %v555, %v643
        %v645 = vpop.f32.mrf.mxu0
        %v646 = vadd.f32 %v557, %v645
        %647 = vmatmul.bf16.gmra.mxu0 %v385
        %v648 = vpop.f32.mrf.mxu0
        %v649 = vadd.f32 %v560, %v648
        %v650 = vpop.f32.mrf.mxu0
        %v651 = vadd.f32 %v562, %v650
        %652 = vmatmul.bf16.gmra.mxu0 %v387
        %v653 = vpop.f32.mrf.mxu0
        %v654 = vadd.f32 %v565, %v653
        %v655 = vpop.f32.mrf.mxu0
        %v656 = vadd.f32 %v567, %v655
        %657 = vmatmul.bf16.gmra.mxu0 %v389
        %v658 = vpop.f32.mrf.mxu0
        %v659 = vadd.f32 %v570, %v658
        %v660 = vpop.f32.mrf.mxu0
        %v661 = vadd.f32 %v572, %v660
        %662 = vmatmul.bf16.gmra.mxu0 %v391
        %v663 = vpop.f32.mrf.mxu0
        %v664 = vadd.f32 %v575, %v663
        %v665 = vpop.f32.mrf.mxu0
        %v666 = vadd.f32 %v577, %v665
        %667 = vmatmul.bf16.gmra.mxu0 %v393
        %v668 = vpop.f32.mrf.mxu0
        %v669 = vadd.f32 %v580, %v668
        %v670 = vpop.f32.mrf.mxu0
        %v671 = vadd.f32 %v582, %v670
        %672 = vmatmul.bf16.gmra.mxu0 %v395
        %v673 = vpop.f32.mrf.mxu0
        %v674 = vadd.f32 %v585, %v673
        %v675 = vpop.f32.mrf.mxu0
        %v676 = vadd.f32 %v587, %v675
        %677 = vmatmul.bf16.gmra.mxu0 %v397
        %v678 = vpop.f32.mrf.mxu0
        %v679 = vadd.f32 %v590, %v678
        %v680 = vpop.f32.mrf.mxu0
        %v681 = vadd.f32 %v592, %v680
        %682 = vmatmul.bf16.gmra.mxu0 %v399
        %v683 = vpop.f32.mrf.mxu0
        %v684 = vadd.f32 %v595, %v683
        %v685 = vpop.f32.mrf.mxu0
        %v686 = vadd.f32 %v597, %v685
        %687 = vmatmul.bf16.gmra.mxu0 %v401
        %v688 = vpop.f32.mrf.mxu0
        %v689 = vadd.f32 %v600, %v688
        %v690 = vpop.f32.mrf.mxu0
        %v691 = vadd.f32 %v602, %v690
        %692 = vmatmul.bf16.gmra.mxu0 %v403
        %v693 = vpop.f32.mrf.mxu0
        %v694 = vadd.f32 %v605, %v693
        %v695 = vpop.f32.mrf.mxu0
        %v696 = vadd.f32 %v607, %v695
        %697 = vmatmul.bf16.gmra.mxu0 %v405
        %v698 = vpop.f32.mrf.mxu0
        %v699 = vadd.f32 %v610, %v698
        %v700 = vpop.f32.mrf.mxu0
        %v701 = vadd.f32 %v612, %v700
        %702 = vmatmul.bf16.gmra.mxu0 %v407
        %v703 = vpop.f32.mrf.mxu0
        %v704 = vadd.f32 %v615, %v703
        %v705 = vpop.f32.mrf.mxu0
        %v706 = vadd.f32 %v617, %v705
        %707 = vmatmul.bf16.gmra.mxu0 %v409
        %v708 = vpop.f32.mrf.mxu0
        %v709 = vadd.f32 %v620, %v708
        %v710 = vpop.f32.mrf.mxu0
        %v711 = vadd.f32 %v622, %v710
        %712 = vmatmul.bf16.gmra.mxu0 %v411
        %v713 = vpop.f32.mrf.mxu0
        %v714 = vadd.f32 %v625, %v713
        %v715 = vpop.f32.mrf.mxu0
        %v716 = vadd.f32 %v627, %v715
        %717 = vdwg.mxu0
        %vm718 = vcmp.gt.f32.partialorder %v639, 0.0
        %vm719 = vcmp.gt.f32.partialorder %v641, 0.0
        %vm720 = vcmp.gt.f32.partialorder %v644, 0.0
        %vm721 = vcmp.gt.f32.partialorder %v646, 0.0
        %vm722 = vcmp.gt.f32.partialorder %v649, 0.0
        %vm723 = vcmp.gt.f32.partialorder %v651, 0.0
        %vm724 = vcmp.gt.f32.partialorder %v654, 0.0
        %vm725 = vcmp.gt.f32.partialorder %v656, 0.0
        %vm726 = vcmp.gt.f32.partialorder %v659, 0.0
        %vm727 = vcmp.gt.f32.partialorder %v661, 0.0
        %vm728 = vcmp.gt.f32.partialorder %v664, 0.0
        %vm729 = vcmp.gt.f32.partialorder %v666, 0.0
        %vm730 = vcmp.gt.f32.partialorder %v669, 0.0
        %vm731 = vcmp.gt.f32.partialorder %v671, 0.0
        %vm732 = vcmp.gt.f32.partialorder %v674, 0.0
        %vm733 = vcmp.gt.f32.partialorder %v676, 0.0
        %vm734 = vcmp.gt.f32.partialorder %v679, 0.0
        %vm735 = vcmp.gt.f32.partialorder %v681, 0.0
        %vm736 = vcmp.gt.f32.partialorder %v684, 0.0
        %vm737 = vcmp.gt.f32.partialorder %v686, 0.0
        %vm738 = vcmp.gt.f32.partialorder %v689, 0.0
        %vm739 = vcmp.gt.f32.partialorder %v691, 0.0
        %vm740 = vcmp.gt.f32.partialorder %v694, 0.0
        %vm741 = vcmp.gt.f32.partialorder %v696, 0.0
        %vm742 = vcmp.gt.f32.partialorder %v699, 0.0
        %vm743 = vcmp.gt.f32.partialorder %v701, 0.0
        %vm744 = vcmp.gt.f32.partialorder %v704, 0.0
        %vm745 = vcmp.gt.f32.partialorder %v706, 0.0
        %vm746 = vcmp.gt.f32.partialorder %v709, 0.0
        %vm747 = vcmp.gt.f32.partialorder %v711, 0.0
        %vm748 = vcmp.gt.f32.partialorder %v714, 0.0
        %vm749 = vcmp.gt.f32.partialorder %v716, 0.0
        %v750 = vmax.f32 %v639, 1.0
        %v751 = vmax.f32 %v641, 1.0
        %v752 = vmax.f32 %v644, 1.0
        %v753 = vmax.f32 %v646, 1.0
        %v754 = vmax.f32 %v649, 1.0
        %v755 = vmax.f32 %v651, 1.0
        %v756 = vmax.f32 %v654, 1.0
        %v757 = vmax.f32 %v656, 1.0
        %v758 = vmax.f32 %v659, 1.0
        %v759 = vmax.f32 %v661, 1.0
        %v760 = vmax.f32 %v664, 1.0
        %v761 = vmax.f32 %v666, 1.0
        %v762 = vmax.f32 %v669, 1.0
        %v763 = vmax.f32 %v671, 1.0
        %v764 = vmax.f32 %v674, 1.0
        %v765 = vmax.f32 %v676, 1.0
        %v766 = vmax.f32 %v679, 1.0
        %v767 = vmax.f32 %v681, 1.0
        %v768 = vmax.f32 %v684, 1.0
        %v769 = vmax.f32 %v686, 1.0
        %v770 = vmax.f32 %v689, 1.0
        %v771 = vmax.f32 %v691, 1.0
        %v772 = vmax.f32 %v694, 1.0
        %v773 = vmax.f32 %v696, 1.0
        %v774 = vmax.f32 %v699, 1.0
        %v775 = vmax.f32 %v701, 1.0
        %v776 = vmax.f32 %v704, 1.0
        %v777 = vmax.f32 %v706, 1.0
        %v778 = vmax.f32 %v709, 1.0
        %v779 = vmax.f32 %v711, 1.0
        %v780 = vmax.f32 %v714, 1.0
        %v781 = vmax.f32 %v716, 1.0
        %v782 = vrcp.pop %v750
        %v783 = vmul.f32 %v750, %v782
        %v784 = vsub.f32 1.0, %v783
        %v785 = vmul.f32 %v782, %v784
        %v786 = vadd.f32 %v782, %v785
        %vm787 = vweird.f32 %v750
        %vm788 = vweird.f32 %v782
        %vm789 = vmor %vm787, %vm788
        %v790 = vsel %vm789, %v782, %v786
        %v791 = vand.u32 2147483647, %v750
        %vm792 = vcmp.eq.f32.partialorder %v791, 8.507059e+37
        %v793 = vand.u32 %v750, 2147483648
        %v794 = vor.u32 1.1754944e-38, %v793
        %v795 = vsel %vm792, %v794, %v790
        %v796 = vmul.f32 1.0, %v795
        %v797 = vrcp.pop %v751
        %v798 = vmul.f32 %v751, %v797
        %v799 = vsub.f32 1.0, %v798
        %v800 = vmul.f32 %v797, %v799
        %v801 = vadd.f32 %v797, %v800
        %vm802 = vweird.f32 %v751
        %vm803 = vweird.f32 %v797
        %vm804 = vmor %vm802, %vm803
        %v805 = vsel %vm804, %v797, %v801
        %v806 = vand.u32 2147483647, %v751
        %vm807 = vcmp.eq.f32.partialorder %v806, 8.507059e+37
        %v808 = vand.u32 %v751, 2147483648
        %v809 = vor.u32 1.1754944e-38, %v808
        %v810 = vsel %vm807, %v809, %v805
        %v811 = vmul.f32 1.0, %v810
        %v812 = vrcp.pop %v752
        %v813 = vmul.f32 %v752, %v812
        %v814 = vsub.f32 1.0, %v813
        %v815 = vmul.f32 %v812, %v814
        %v816 = vadd.f32 %v812, %v815
        %vm817 = vweird.f32 %v752
        %vm818 = vweird.f32 %v812
        %vm819 = vmor %vm817, %vm818
        %v820 = vsel %vm819, %v812, %v816
        %v821 = vand.u32 2147483647, %v752
        %vm822 = vcmp.eq.f32.partialorder %v821, 8.507059e+37
        %v823 = vand.u32 %v752, 2147483648
        %v824 = vor.u32 1.1754944e-38, %v823
        %v825 = vsel %vm822, %v824, %v820
        %v826 = vmul.f32 1.0, %v825
        %v827 = vrcp.pop %v753
        %v828 = vmul.f32 %v753, %v827
        %v829 = vsub.f32 1.0, %v828
        %v830 = vmul.f32 %v827, %v829
        %v831 = vadd.f32 %v827, %v830
        %vm832 = vweird.f32 %v753
        %vm833 = vweird.f32 %v827
        %vm834 = vmor %vm832, %vm833
        %v835 = vsel %vm834, %v827, %v831
        %v836 = vand.u32 2147483647, %v753
        %vm837 = vcmp.eq.f32.partialorder %v836, 8.507059e+37
        %v838 = vand.u32 %v753, 2147483648
        %v839 = vor.u32 1.1754944e-38, %v838
        %v840 = vsel %vm837, %v839, %v835
        %v841 = vmul.f32 1.0, %v840
        %v842 = vrcp.pop %v754
        %v843 = vmul.f32 %v754, %v842
        %v844 = vsub.f32 1.0, %v843
        %v845 = vmul.f32 %v842, %v844
        %v846 = vadd.f32 %v842, %v845
        %vm847 = vweird.f32 %v754
        %vm848 = vweird.f32 %v842
        %vm849 = vmor %vm847, %vm848
        %v850 = vsel %vm849, %v842, %v846
        %v851 = vand.u32 2147483647, %v754
        %vm852 = vcmp.eq.f32.partialorder %v851, 8.507059e+37
        %v853 = vand.u32 %v754, 2147483648
        %v854 = vor.u32 1.1754944e-38, %v853
        %v855 = vsel %vm852, %v854, %v850
        %v856 = vmul.f32 1.0, %v855
        %v857 = vrcp.pop %v755
        %v858 = vmul.f32 %v755, %v857
        %v859 = vsub.f32 1.0, %v858
        %v860 = vmul.f32 %v857, %v859
        %v861 = vadd.f32 %v857, %v860
        %vm862 = vweird.f32 %v755
        %vm863 = vweird.f32 %v857
        %vm864 = vmor %vm862, %vm863
        %v865 = vsel %vm864, %v857, %v861
        %v866 = vand.u32 2147483647, %v755
        %vm867 = vcmp.eq.f32.partialorder %v866, 8.507059e+37
        %v868 = vand.u32 %v755, 2147483648
        %v869 = vor.u32 1.1754944e-38, %v868
        %v870 = vsel %vm867, %v869, %v865
        %v871 = vmul.f32 1.0, %v870
        %v872 = vrcp.pop %v756
        %v873 = vmul.f32 %v756, %v872
        %v874 = vsub.f32 1.0, %v873
        %v875 = vmul.f32 %v872, %v874
        %v876 = vadd.f32 %v872, %v875
        %vm877 = vweird.f32 %v756
        %vm878 = vweird.f32 %v872
        %vm879 = vmor %vm877, %vm878
        %v880 = vsel %vm879, %v872, %v876
        %v881 = vand.u32 2147483647, %v756
        %vm882 = vcmp.eq.f32.partialorder %v881, 8.507059e+37
        %v883 = vand.u32 %v756, 2147483648
        %v884 = vor.u32 1.1754944e-38, %v883
        %v885 = vsel %vm882, %v884, %v880
        %v886 = vmul.f32 1.0, %v885
        %v887 = vrcp.pop %v757
        %v888 = vmul.f32 %v757, %v887
        %v889 = vsub.f32 1.0, %v888
        %v890 = vmul.f32 %v887, %v889
        %v891 = vadd.f32 %v887, %v890
        %vm892 = vweird.f32 %v757
        %vm893 = vweird.f32 %v887
        %vm894 = vmor %vm892, %vm893
        %v895 = vsel %vm894, %v887, %v891
        %v896 = vand.u32 2147483647, %v757
        %vm897 = vcmp.eq.f32.partialorder %v896, 8.507059e+37
        %v898 = vand.u32 %v757, 2147483648
        %v899 = vor.u32 1.1754944e-38, %v898
        %v900 = vsel %vm897, %v899, %v895
        %v901 = vmul.f32 1.0, %v900
        %v902 = vrcp.pop %v758
        %v903 = vmul.f32 %v758, %v902
        %v904 = vsub.f32 1.0, %v903
        %v905 = vmul.f32 %v902, %v904
        %v906 = vadd.f32 %v902, %v905
        %vm907 = vweird.f32 %v758
        %vm908 = vweird.f32 %v902
        %vm909 = vmor %vm907, %vm908
        %v910 = vsel %vm909, %v902, %v906
        %v911 = vand.u32 2147483647, %v758
        %vm912 = vcmp.eq.f32.partialorder %v911, 8.507059e+37
        %v913 = vand.u32 %v758, 2147483648
        %v914 = vor.u32 1.1754944e-38, %v913
        %v915 = vsel %vm912, %v914, %v910
        %v916 = vmul.f32 1.0, %v915
        %v917 = vrcp.pop %v759
        %v918 = vmul.f32 %v759, %v917
        %v919 = vsub.f32 1.0, %v918
        %v920 = vmul.f32 %v917, %v919
        %v921 = vadd.f32 %v917, %v920
        %vm922 = vweird.f32 %v759
        %vm923 = vweird.f32 %v917
        %vm924 = vmor %vm922, %vm923
        %v925 = vsel %vm924, %v917, %v921
        %v926 = vand.u32 2147483647, %v759
        %vm927 = vcmp.eq.f32.partialorder %v926, 8.507059e+37
        %v928 = vand.u32 %v759, 2147483648
        %v929 = vor.u32 1.1754944e-38, %v928
        %v930 = vsel %vm927, %v929, %v925
        %v931 = vmul.f32 1.0, %v930
        %v932 = vrcp.pop %v760
        %v933 = vmul.f32 %v760, %v932
        %v934 = vsub.f32 1.0, %v933
        %v935 = vmul.f32 %v932, %v934
        %v936 = vadd.f32 %v932, %v935
        %vm937 = vweird.f32 %v760
        %vm938 = vweird.f32 %v932
        %vm939 = vmor %vm937, %vm938
        %v940 = vsel %vm939, %v932, %v936
        %v941 = vand.u32 2147483647, %v760
        %vm942 = vcmp.eq.f32.partialorder %v941, 8.507059e+37
        %v943 = vand.u32 %v760, 2147483648
        %v944 = vor.u32 1.1754944e-38, %v943
        %v945 = vsel %vm942, %v944, %v940
        %v946 = vmul.f32 1.0, %v945
        %v947 = vrcp.pop %v761
        %v948 = vmul.f32 %v761, %v947
        %v949 = vsub.f32 1.0, %v948
        %v950 = vmul.f32 %v947, %v949
        %v951 = vadd.f32 %v947, %v950
        %vm952 = vweird.f32 %v761
        %vm953 = vweird.f32 %v947
        %vm954 = vmor %vm952, %vm953
        %v955 = vsel %vm954, %v947, %v951
        %v956 = vand.u32 2147483647, %v761
        %vm957 = vcmp.eq.f32.partialorder %v956, 8.507059e+37
        %v958 = vand.u32 %v761, 2147483648
        %v959 = vor.u32 1.1754944e-38, %v958
        %v960 = vsel %vm957, %v959, %v955
        %v961 = vmul.f32 1.0, %v960
        %v962 = vrcp.pop %v762
        %v963 = vmul.f32 %v762, %v962
        %v964 = vsub.f32 1.0, %v963
        %v965 = vmul.f32 %v962, %v964
        %v966 = vadd.f32 %v962, %v965
        %vm967 = vweird.f32 %v762
        %vm968 = vweird.f32 %v962
        %vm969 = vmor %vm967, %vm968
        %v970 = vsel %vm969, %v962, %v966
        %v971 = vand.u32 2147483647, %v762
        %vm972 = vcmp.eq.f32.partialorder %v971, 8.507059e+37
        %v973 = vand.u32 %v762, 2147483648
        %v974 = vor.u32 1.1754944e-38, %v973
        %v975 = vsel %vm972, %v974, %v970
        %v976 = vmul.f32 1.0, %v975
        %v977 = vrcp.pop %v763
        %v978 = vmul.f32 %v763, %v977
        %v979 = vsub.f32 1.0, %v978
        %v980 = vmul.f32 %v977, %v979
        %v981 = vadd.f32 %v977, %v980
        %vm982 = vweird.f32 %v763
        %vm983 = vweird.f32 %v977
        %vm984 = vmor %vm982, %vm983
        %v985 = vsel %vm984, %v977, %v981
        %v986 = vand.u32 2147483647, %v763
        %vm987 = vcmp.eq.f32.partialorder %v986, 8.507059e+37
        %v988 = vand.u32 %v763, 2147483648
        %v989 = vor.u32 1.1754944e-38, %v988
        %v990 = vsel %vm987, %v989, %v985
        %v991 = vmul.f32 1.0, %v990
        %v992 = vrcp.pop %v764
        %v993 = vmul.f32 %v764, %v992
        %v994 = vsub.f32 1.0, %v993
        %v995 = vmul.f32 %v992, %v994
        %v996 = vadd.f32 %v992, %v995
        %vm997 = vweird.f32 %v764
        %vm998 = vweird.f32 %v992
        %vm999 = vmor %vm997, %vm998
        %v1000 = vsel %vm999, %v992, %v996
        %v1001 = vand.u32 2147483647, %v764
        %vm1002 = vcmp.eq.f32.partialorder %v1001, 8.507059e+37
        %v1003 = vand.u32 %v764, 2147483648
        %v1004 = vor.u32 1.1754944e-38, %v1003
        %v1005 = vsel %vm1002, %v1004, %v1000
        %v1006 = vmul.f32 1.0, %v1005
        %v1007 = vrcp.pop %v765
        %v1008 = vmul.f32 %v765, %v1007
        %v1009 = vsub.f32 1.0, %v1008
        %v1010 = vmul.f32 %v1007, %v1009
        %v1011 = vadd.f32 %v1007, %v1010
        %vm1012 = vweird.f32 %v765
        %vm1013 = vweird.f32 %v1007
        %vm1014 = vmor %vm1012, %vm1013
        %v1015 = vsel %vm1014, %v1007, %v1011
        %v1016 = vand.u32 2147483647, %v765
        %vm1017 = vcmp.eq.f32.partialorder %v1016, 8.507059e+37
        %v1018 = vand.u32 %v765, 2147483648
        %v1019 = vor.u32 1.1754944e-38, %v1018
        %v1020 = vsel %vm1017, %v1019, %v1015
        %v1021 = vmul.f32 1.0, %v1020
        %v1022 = vrcp.pop %v766
        %v1023 = vmul.f32 %v766, %v1022
        %v1024 = vsub.f32 1.0, %v1023
        %v1025 = vmul.f32 %v1022, %v1024
        %v1026 = vadd.f32 %v1022, %v1025
        %vm1027 = vweird.f32 %v766
        %vm1028 = vweird.f32 %v1022
        %vm1029 = vmor %vm1027, %vm1028
        %v1030 = vsel %vm1029, %v1022, %v1026
        %v1031 = vand.u32 2147483647, %v766
        %vm1032 = vcmp.eq.f32.partialorder %v1031, 8.507059e+37
        %v1033 = vand.u32 %v766, 2147483648
        %v1034 = vor.u32 1.1754944e-38, %v1033
        %v1035 = vsel %vm1032, %v1034, %v1030
        %v1036 = vmul.f32 1.0, %v1035
        %v1037 = vrcp.pop %v767
        %v1038 = vmul.f32 %v767, %v1037
        %v1039 = vsub.f32 1.0, %v1038
        %v1040 = vmul.f32 %v1037, %v1039
        %v1041 = vadd.f32 %v1037, %v1040
        %vm1042 = vweird.f32 %v767
        %vm1043 = vweird.f32 %v1037
        %vm1044 = vmor %vm1042, %vm1043
        %v1045 = vsel %vm1044, %v1037, %v1041
        %v1046 = vand.u32 2147483647, %v767
        %vm1047 = vcmp.eq.f32.partialorder %v1046, 8.507059e+37
        %v1048 = vand.u32 %v767, 2147483648
        %v1049 = vor.u32 1.1754944e-38, %v1048
        %v1050 = vsel %vm1047, %v1049, %v1045
        %v1051 = vmul.f32 1.0, %v1050
        %v1052 = vrcp.pop %v768
        %v1053 = vmul.f32 %v768, %v1052
        %v1054 = vsub.f32 1.0, %v1053
        %v1055 = vmul.f32 %v1052, %v1054
        %v1056 = vadd.f32 %v1052, %v1055
        %vm1057 = vweird.f32 %v768
        %vm1058 = vweird.f32 %v1052
        %vm1059 = vmor %vm1057, %vm1058
        %v1060 = vsel %vm1059, %v1052, %v1056
        %v1061 = vand.u32 2147483647, %v768
        %vm1062 = vcmp.eq.f32.partialorder %v1061, 8.507059e+37
        %v1063 = vand.u32 %v768, 2147483648
        %v1064 = vor.u32 1.1754944e-38, %v1063
        %v1065 = vsel %vm1062, %v1064, %v1060
        %v1066 = vmul.f32 1.0, %v1065
        %v1067 = vrcp.pop %v769
        %v1068 = vmul.f32 %v769, %v1067
        %v1069 = vsub.f32 1.0, %v1068
        %v1070 = vmul.f32 %v1067, %v1069
        %v1071 = vadd.f32 %v1067, %v1070
        %vm1072 = vweird.f32 %v769
        %vm1073 = vweird.f32 %v1067
        %vm1074 = vmor %vm1072, %vm1073
        %v1075 = vsel %vm1074, %v1067, %v1071
        %v1076 = vand.u32 2147483647, %v769
        %vm1077 = vcmp.eq.f32.partialorder %v1076, 8.507059e+37
        %v1078 = vand.u32 %v769, 2147483648
        %v1079 = vor.u32 1.1754944e-38, %v1078
        %v1080 = vsel %vm1077, %v1079, %v1075
        %v1081 = vmul.f32 1.0, %v1080
        %v1082 = vrcp.pop %v770
        %v1083 = vmul.f32 %v770, %v1082
        %v1084 = vsub.f32 1.0, %v1083
        %v1085 = vmul.f32 %v1082, %v1084
        %v1086 = vadd.f32 %v1082, %v1085
        %vm1087 = vweird.f32 %v770
        %vm1088 = vweird.f32 %v1082
        %vm1089 = vmor %vm1087, %vm1088
        %v1090 = vsel %vm1089, %v1082, %v1086
        %v1091 = vand.u32 2147483647, %v770
        %vm1092 = vcmp.eq.f32.partialorder %v1091, 8.507059e+37
        %v1093 = vand.u32 %v770, 2147483648
        %v1094 = vor.u32 1.1754944e-38, %v1093
        %v1095 = vsel %vm1092, %v1094, %v1090
        %v1096 = vmul.f32 1.0, %v1095
        %v1097 = vrcp.pop %v771
        %v1098 = vmul.f32 %v771, %v1097
        %v1099 = vsub.f32 1.0, %v1098
        %v1100 = vmul.f32 %v1097, %v1099
        %v1101 = vadd.f32 %v1097, %v1100
        %vm1102 = vweird.f32 %v771
        %vm1103 = vweird.f32 %v1097
        %vm1104 = vmor %vm1102, %vm1103
        %v1105 = vsel %vm1104, %v1097, %v1101
        %v1106 = vand.u32 2147483647, %v771
        %vm1107 = vcmp.eq.f32.partialorder %v1106, 8.507059e+37
        %v1108 = vand.u32 %v771, 2147483648
        %v1109 = vor.u32 1.1754944e-38, %v1108
        %v1110 = vsel %vm1107, %v1109, %v1105
        %v1111 = vmul.f32 1.0, %v1110
        %v1112 = vrcp.pop %v772
        %v1113 = vmul.f32 %v772, %v1112
        %v1114 = vsub.f32 1.0, %v1113
        %v1115 = vmul.f32 %v1112, %v1114
        %v1116 = vadd.f32 %v1112, %v1115
        %vm1117 = vweird.f32 %v772
        %vm1118 = vweird.f32 %v1112
        %vm1119 = vmor %vm1117, %vm1118
        %v1120 = vsel %vm1119, %v1112, %v1116
        %v1121 = vand.u32 2147483647, %v772
        %vm1122 = vcmp.eq.f32.partialorder %v1121, 8.507059e+37
        %v1123 = vand.u32 %v772, 2147483648
        %v1124 = vor.u32 1.1754944e-38, %v1123
        %v1125 = vsel %vm1122, %v1124, %v1120
        %v1126 = vmul.f32 1.0, %v1125
        %v1127 = vrcp.pop %v773
        %v1128 = vmul.f32 %v773, %v1127
        %v1129 = vsub.f32 1.0, %v1128
        %v1130 = vmul.f32 %v1127, %v1129
        %v1131 = vadd.f32 %v1127, %v1130
        %vm1132 = vweird.f32 %v773
        %vm1133 = vweird.f32 %v1127
        %vm1134 = vmor %vm1132, %vm1133
        %v1135 = vsel %vm1134, %v1127, %v1131
        %v1136 = vand.u32 2147483647, %v773
        %vm1137 = vcmp.eq.f32.partialorder %v1136, 8.507059e+37
        %v1138 = vand.u32 %v773, 2147483648
        %v1139 = vor.u32 1.1754944e-38, %v1138
        %v1140 = vsel %vm1137, %v1139, %v1135
        %v1141 = vmul.f32 1.0, %v1140
        %v1142 = vrcp.pop %v774
        %v1143 = vmul.f32 %v774, %v1142
        %v1144 = vsub.f32 1.0, %v1143
        %v1145 = vmul.f32 %v1142, %v1144
        %v1146 = vadd.f32 %v1142, %v1145
        %vm1147 = vweird.f32 %v774
        %vm1148 = vweird.f32 %v1142
        %vm1149 = vmor %vm1147, %vm1148
        %v1150 = vsel %vm1149, %v1142, %v1146
        %v1151 = vand.u32 2147483647, %v774
        %vm1152 = vcmp.eq.f32.partialorder %v1151, 8.507059e+37
        %v1153 = vand.u32 %v774, 2147483648
        %v1154 = vor.u32 1.1754944e-38, %v1153
        %v1155 = vsel %vm1152, %v1154, %v1150
        %v1156 = vmul.f32 1.0, %v1155
        %v1157 = vrcp.pop %v775
        %v1158 = vmul.f32 %v775, %v1157
        %v1159 = vsub.f32 1.0, %v1158
        %v1160 = vmul.f32 %v1157, %v1159
        %v1161 = vadd.f32 %v1157, %v1160
        %vm1162 = vweird.f32 %v775
        %vm1163 = vweird.f32 %v1157
        %vm1164 = vmor %vm1162, %vm1163
        %v1165 = vsel %vm1164, %v1157, %v1161
        %v1166 = vand.u32 2147483647, %v775
        %vm1167 = vcmp.eq.f32.partialorder %v1166, 8.507059e+37
        %v1168 = vand.u32 %v775, 2147483648
        %v1169 = vor.u32 1.1754944e-38, %v1168
        %v1170 = vsel %vm1167, %v1169, %v1165
        %v1171 = vmul.f32 1.0, %v1170
        %v1172 = vrcp.pop %v776
        %v1173 = vmul.f32 %v776, %v1172
        %v1174 = vsub.f32 1.0, %v1173
        %v1175 = vmul.f32 %v1172, %v1174
        %v1176 = vadd.f32 %v1172, %v1175
        %vm1177 = vweird.f32 %v776
        %vm1178 = vweird.f32 %v1172
        %vm1179 = vmor %vm1177, %vm1178
        %v1180 = vsel %vm1179, %v1172, %v1176
        %v1181 = vand.u32 2147483647, %v776
        %vm1182 = vcmp.eq.f32.partialorder %v1181, 8.507059e+37
        %v1183 = vand.u32 %v776, 2147483648
        %v1184 = vor.u32 1.1754944e-38, %v1183
        %v1185 = vsel %vm1182, %v1184, %v1180
        %v1186 = vmul.f32 1.0, %v1185
        %v1187 = vrcp.pop %v777
        %v1188 = vmul.f32 %v777, %v1187
        %v1189 = vsub.f32 1.0, %v1188
        %v1190 = vmul.f32 %v1187, %v1189
        %v1191 = vadd.f32 %v1187, %v1190
        %vm1192 = vweird.f32 %v777
        %vm1193 = vweird.f32 %v1187
        %vm1194 = vmor %vm1192, %vm1193
        %v1195 = vsel %vm1194, %v1187, %v1191
        %v1196 = vand.u32 2147483647, %v777
        %vm1197 = vcmp.eq.f32.partialorder %v1196, 8.507059e+37
        %v1198 = vand.u32 %v777, 2147483648
        %v1199 = vor.u32 1.1754944e-38, %v1198
        %v1200 = vsel %vm1197, %v1199, %v1195
        %v1201 = vmul.f32 1.0, %v1200
        %v1202 = vrcp.pop %v778
        %v1203 = vmul.f32 %v778, %v1202
        %v1204 = vsub.f32 1.0, %v1203
        %v1205 = vmul.f32 %v1202, %v1204
        %v1206 = vadd.f32 %v1202, %v1205
        %vm1207 = vweird.f32 %v778
        %vm1208 = vweird.f32 %v1202
        %vm1209 = vmor %vm1207, %vm1208
        %v1210 = vsel %vm1209, %v1202, %v1206
        %v1211 = vand.u32 2147483647, %v778
        %vm1212 = vcmp.eq.f32.partialorder %v1211, 8.507059e+37
        %v1213 = vand.u32 %v778, 2147483648
        %v1214 = vor.u32 1.1754944e-38, %v1213
        %v1215 = vsel %vm1212, %v1214, %v1210
        %v1216 = vmul.f32 1.0, %v1215
        %v1217 = vrcp.pop %v779
        %v1218 = vmul.f32 %v779, %v1217
        %v1219 = vsub.f32 1.0, %v1218
        %v1220 = vmul.f32 %v1217, %v1219
        %v1221 = vadd.f32 %v1217, %v1220
        %vm1222 = vweird.f32 %v779
        %vm1223 = vweird.f32 %v1217
        %vm1224 = vmor %vm1222, %vm1223
        %v1225 = vsel %vm1224, %v1217, %v1221
        %v1226 = vand.u32 2147483647, %v779
        %vm1227 = vcmp.eq.f32.partialorder %v1226, 8.507059e+37
        %v1228 = vand.u32 %v779, 2147483648
        %v1229 = vor.u32 1.1754944e-38, %v1228
        %v1230 = vsel %vm1227, %v1229, %v1225
        %v1231 = vmul.f32 1.0, %v1230
        %v1232 = vrcp.pop %v780
        %v1233 = vmul.f32 %v780, %v1232
        %v1234 = vsub.f32 1.0, %v1233
        %v1235 = vmul.f32 %v1232, %v1234
        %v1236 = vadd.f32 %v1232, %v1235
        %vm1237 = vweird.f32 %v780
        %vm1238 = vweird.f32 %v1232
        %vm1239 = vmor %vm1237, %vm1238
        %v1240 = vsel %vm1239, %v1232, %v1236
        %v1241 = vand.u32 2147483647, %v780
        %vm1242 = vcmp.eq.f32.partialorder %v1241, 8.507059e+37
        %v1243 = vand.u32 %v780, 2147483648
        %v1244 = vor.u32 1.1754944e-38, %v1243
        %v1245 = vsel %vm1242, %v1244, %v1240
        %v1246 = vmul.f32 1.0, %v1245
        %v1247 = vrcp.pop %v781
        %v1248 = vmul.f32 %v781, %v1247
        %v1249 = vsub.f32 1.0, %v1248
        %v1250 = vmul.f32 %v1247, %v1249
        %v1251 = vadd.f32 %v1247, %v1250
        %vm1252 = vweird.f32 %v781
        %vm1253 = vweird.f32 %v1247
        %vm1254 = vmor %vm1252, %vm1253
        %v1255 = vsel %vm1254, %v1247, %v1251
        %v1256 = vand.u32 2147483647, %v781
        %vm1257 = vcmp.eq.f32.partialorder %v1256, 8.507059e+37
        %v1258 = vand.u32 %v781, 2147483648
        %v1259 = vor.u32 1.1754944e-38, %v1258
        %v1260 = vsel %vm1257, %v1259, %v1255
        %v1261 = vmul.f32 1.0, %v1260
        %v1262 = vsel %vm718, %v796, 0.0
        %v1263 = vsel %vm719, %v811, 0.0
        %v1264 = vsel %vm720, %v826, 0.0
        %v1265 = vsel %vm721, %v841, 0.0
        %v1266 = vsel %vm722, %v856, 0.0
        %v1267 = vsel %vm723, %v871, 0.0
        %v1268 = vsel %vm724, %v886, 0.0
        %v1269 = vsel %vm725, %v901, 0.0
        %v1270 = vsel %vm726, %v916, 0.0
        %v1271 = vsel %vm727, %v931, 0.0
        %v1272 = vsel %vm728, %v946, 0.0
        %v1273 = vsel %vm729, %v961, 0.0
        %v1274 = vsel %vm730, %v976, 0.0
        %v1275 = vsel %vm731, %v991, 0.0
        %v1276 = vsel %vm732, %v1006, 0.0
        %v1277 = vsel %vm733, %v1021, 0.0
        %v1278 = vsel %vm734, %v1036, 0.0
        %v1279 = vsel %vm735, %v1051, 0.0
        %v1280 = vsel %vm736, %v1066, 0.0
        %v1281 = vsel %vm737, %v1081, 0.0
        %v1282 = vsel %vm738, %v1096, 0.0
        %v1283 = vsel %vm739, %v1111, 0.0
        %v1284 = vsel %vm740, %v1126, 0.0
        %v1285 = vsel %vm741, %v1141, 0.0
        %v1286 = vsel %vm742, %v1156, 0.0
        %v1287 = vsel %vm743, %v1171, 0.0
        %v1288 = vsel %vm744, %v1186, 0.0
        %v1289 = vsel %vm745, %v1201, 0.0
        %v1290 = vsel %vm746, %v1216, 0.0
        %v1291 = vsel %vm747, %v1231, 0.0
        %v1292 = vsel %vm748, %v1246, 0.0
        %v1293 = vsel %vm749, %v1261, 0.0
        %1326 = vrot.lane.b32.xlu0 %v1262, 112
        %v1327 = vpop.permute.xlu0 %1326
        %1328 = vrot.lane.b32.xlu0 %v1263, 112
        %v1329 = vpop.permute.xlu0 %1328
        %1330 = vrot.lane.b32.xlu0 %v1264, 112
        %v1331 = vpop.permute.xlu0 %1330
        %1332 = vrot.lane.b32.xlu0 %v1265, 112
        %v1333 = vpop.permute.xlu0 %1332
        %1334 = vrot.lane.b32.xlu0 %v1266, 112
        %v1335 = vpop.permute.xlu0 %1334
        %1336 = vrot.lane.b32.xlu0 %v1267, 112
        %v1337 = vpop.permute.xlu0 %1336
        %1338 = vrot.lane.b32.xlu0 %v1268, 112
        %v1339 = vpop.permute.xlu0 %1338
        %1340 = vrot.lane.b32.xlu0 %v1269, 112
        %v1341 = vpop.permute.xlu0 %1340
        %1342 = vrot.lane.b32.xlu0 %v1270, 112
        %v1343 = vpop.permute.xlu0 %1342
        %1344 = vrot.lane.b32.xlu0 %v1271, 112
        %v1345 = vpop.permute.xlu0 %1344
        %1346 = vrot.lane.b32.xlu0 %v1272, 112
        %v1347 = vpop.permute.xlu0 %1346
        %1348 = vrot.lane.b32.xlu0 %v1273, 112
        %v1349 = vpop.permute.xlu0 %1348
        %1350 = vrot.lane.b32.xlu0 %v1274, 112
        %v1351 = vpop.permute.xlu0 %1350
        %1352 = vrot.lane.b32.xlu0 %v1275, 112
        %v1353 = vpop.permute.xlu0 %1352
        %1354 = vrot.lane.b32.xlu0 %v1276, 112
        %v1355 = vpop.permute.xlu0 %1354
        %1356 = vrot.lane.b32.xlu0 %v1277, 112
        %v1357 = vpop.permute.xlu0 %1356
        %1358 = vrot.lane.b32.xlu0 %v1278, 112
        %v1359 = vpop.permute.xlu0 %1358
        %1360 = vrot.lane.b32.xlu0 %v1279, 112
        %v1361 = vpop.permute.xlu0 %1360
        %1362 = vrot.lane.b32.xlu0 %v1280, 112
        %v1363 = vpop.permute.xlu0 %1362
        %1364 = vrot.lane.b32.xlu0 %v1281, 112
        %v1365 = vpop.permute.xlu0 %1364
        %1366 = vrot.lane.b32.xlu0 %v1282, 112
        %v1367 = vpop.permute.xlu0 %1366
        %1368 = vrot.lane.b32.xlu0 %v1283, 112
        %v1369 = vpop.permute.xlu0 %1368
        %1370 = vrot.lane.b32.xlu0 %v1284, 112
        %v1371 = vpop.permute.xlu0 %1370
        %1372 = vrot.lane.b32.xlu0 %v1285, 112
        %v1373 = vpop.permute.xlu0 %1372
        %1374 = vrot.lane.b32.xlu0 %v1286, 112
        %v1375 = vpop.permute.xlu0 %1374
        %1376 = vrot.lane.b32.xlu0 %v1287, 112
        %v1377 = vpop.permute.xlu0 %1376
        %1378 = vrot.lane.b32.xlu0 %v1288, 112
        %v1379 = vpop.permute.xlu0 %1378
        %1380 = vrot.lane.b32.xlu0 %v1289, 112
        %v1381 = vpop.permute.xlu0 %1380
        %1382 = vrot.lane.b32.xlu0 %v1290, 112
        %v1383 = vpop.permute.xlu0 %1382
        %1384 = vrot.lane.b32.xlu0 %v1291, 112
        %v1385 = vpop.permute.xlu0 %1384
        %1386 = vrot.lane.b32.xlu0 %v1292, 112
        %v1387 = vpop.permute.xlu0 %1386
        %1388 = vrot.lane.b32.xlu0 %v1293, 112
        %v1389 = vpop.permute.xlu0 %1388
        %s1422 = scalar_lea.vmem [#allocation4], %s121
        %vm1423 = vcmask 7168
        %1424 = vst.msk [vmem:[%s1422] sm:$0xff] %vm1423, %v1327
        %1425 = vst.msk [vmem:[%s1422 + $0x8] sm:$0xff] %vm1423, %v1329
        %1426 = vst.msk [vmem:[%s1422 + $0x10] sm:$0xff] %vm1423, %v1331
        %1427 = vst.msk [vmem:[%s1422 + $0x18] sm:$0xff] %vm1423, %v1333
        %1428 = vst.msk [vmem:[%s1422 + $0x20] sm:$0xff] %vm1423, %v1335
        %1429 = vst.msk [vmem:[%s1422 + $0x28] sm:$0xff] %vm1423, %v1337
        %1430 = vst.msk [vmem:[%s1422 + $0x30] sm:$0xff] %vm1423, %v1339
        %1431 = vst.msk [vmem:[%s1422 + $0x38] sm:$0xff] %vm1423, %v1341
        %1432 = vst.msk [vmem:[%s1422 + $0x40] sm:$0xff] %vm1423, %v1343
        %1433 = vst.msk [vmem:[%s1422 + $0x48] sm:$0xff] %vm1423, %v1345
        %1434 = vst.msk [vmem:[%s1422 + $0x50] sm:$0xff] %vm1423, %v1347
        %1435 = vst.msk [vmem:[%s1422 + $0x58] sm:$0xff] %vm1423, %v1349
        %1436 = vst.msk [vmem:[%s1422 + $0x60] sm:$0xff] %vm1423, %v1351
        %1437 = vst.msk [vmem:[%s1422 + $0x68] sm:$0xff] %vm1423, %v1353
        %1438 = vst.msk [vmem:[%s1422 + $0x70] sm:$0xff] %vm1423, %v1355
        %1439 = vst.msk [vmem:[%s1422 + $0x78] sm:$0xff] %vm1423, %v1357
        %1440 = vst.msk [vmem:[%s1422 + $0x80] sm:$0xff] %vm1423, %v1359
        %1441 = vst.msk [vmem:[%s1422 + $0x88] sm:$0xff] %vm1423, %v1361
        %1442 = vst.msk [vmem:[%s1422 + $0x90] sm:$0xff] %vm1423, %v1363
        %1443 = vst.msk [vmem:[%s1422 + $0x98] sm:$0xff] %vm1423, %v1365
        %1444 = vst.msk [vmem:[%s1422 + $0xa0] sm:$0xff] %vm1423, %v1367
        %1445 = vst.msk [vmem:[%s1422 + $0xa8] sm:$0xff] %vm1423, %v1369
        %1446 = vst.msk [vmem:[%s1422 + $0xb0] sm:$0xff] %vm1423, %v1371
        %1447 = vst.msk [vmem:[%s1422 + $0xb8] sm:$0xff] %vm1423, %v1373
        %1448 = vst.msk [vmem:[%s1422 + $0xc0] sm:$0xff] %vm1423, %v1375
        %1449 = vst.msk [vmem:[%s1422 + $0xc8] sm:$0xff] %vm1423, %v1377
        %1450 = vst.msk [vmem:[%s1422 + $0xd0] sm:$0xff] %vm1423, %v1379
        %1451 = vst.msk [vmem:[%s1422 + $0xd8] sm:$0xff] %vm1423, %v1381
        %1452 = vst.msk [vmem:[%s1422 + $0xe0] sm:$0xff] %vm1423, %v1383
        %1453 = vst.msk [vmem:[%s1422 + $0xe8] sm:$0xff] %vm1423, %v1385
        %1454 = vst.msk [vmem:[%s1422 + $0xf0] sm:$0xff] %vm1423, %v1387
        %1455 = vst.msk [vmem:[%s1422 + $0xf8] sm:$0xff] %vm1423, %v1389
        %1456 = vset.pattern.permute.xlu0 16
        %1457 = vperm.xlu0 %1456, %v1262
        %v1458 = vpop.permute.xlu0 %1457
        %1460 = vset.pattern.permute.xlu0 16
        %1461 = vperm.xlu0 %1460, %v1263
        %v1462 = vpop.permute.xlu0 %1461
        %1464 = vset.pattern.permute.xlu0 16
        %1465 = vperm.xlu0 %1464, %v1264
        %v1466 = vpop.permute.xlu0 %1465
        %1468 = vset.pattern.permute.xlu0 16
        %1469 = vperm.xlu0 %1468, %v1265
        %v1470 = vpop.permute.xlu0 %1469
        %1472 = vset.pattern.permute.xlu0 16
        %1473 = vperm.xlu0 %1472, %v1266
        %v1474 = vpop.permute.xlu0 %1473
        %1476 = vset.pattern.permute.xlu0 16
        %1477 = vperm.xlu0 %1476, %v1267
        %v1478 = vpop.permute.xlu0 %1477
        %1480 = vset.pattern.permute.xlu0 16
        %1481 = vperm.xlu0 %1480, %v1268
        %v1482 = vpop.permute.xlu0 %1481
        %1484 = vset.pattern.permute.xlu0 16
        %1485 = vperm.xlu0 %1484, %v1269
        %v1486 = vpop.permute.xlu0 %1485
        %1488 = vset.pattern.permute.xlu0 16
        %1489 = vperm.xlu0 %1488, %v1270
        %v1490 = vpop.permute.xlu0 %1489
        %1492 = vset.pattern.permute.xlu0 16
        %1493 = vperm.xlu0 %1492, %v1271
        %v1494 = vpop.permute.xlu0 %1493
        %1496 = vset.pattern.permute.xlu0 16
        %1497 = vperm.xlu0 %1496, %v1272
        %v1498 = vpop.permute.xlu0 %1497
        %1500 = vset.pattern.permute.xlu0 16
        %1501 = vperm.xlu0 %1500, %v1273
        %v1502 = vpop.permute.xlu0 %1501
        %1504 = vset.pattern.permute.xlu0 16
        %1505 = vperm.xlu0 %1504, %v1274
        %v1506 = vpop.permute.xlu0 %1505
        %1508 = vset.pattern.permute.xlu0 16
        %1509 = vperm.xlu0 %1508, %v1275
        %v1510 = vpop.permute.xlu0 %1509
        %1512 = vset.pattern.permute.xlu0 16
        %1513 = vperm.xlu0 %1512, %v1276
        %v1514 = vpop.permute.xlu0 %1513
        %1516 = vset.pattern.permute.xlu0 16
        %1517 = vperm.xlu0 %1516, %v1277
        %v1518 = vpop.permute.xlu0 %1517
        %1520 = vset.pattern.permute.xlu0 16
        %1521 = vperm.xlu0 %1520, %v1278
        %v1522 = vpop.permute.xlu0 %1521
        %1524 = vset.pattern.permute.xlu0 16
        %1525 = vperm.xlu0 %1524, %v1279
        %v1526 = vpop.permute.xlu0 %1525
        %1528 = vset.pattern.permute.xlu0 16
        %1529 = vperm.xlu0 %1528, %v1280
        %v1530 = vpop.permute.xlu0 %1529
        %1532 = vset.pattern.permute.xlu0 16
        %1533 = vperm.xlu0 %1532, %v1281
        %v1534 = vpop.permute.xlu0 %1533
        %1536 = vset.pattern.permute.xlu0 16
        %1537 = vperm.xlu0 %1536, %v1282
        %v1538 = vpop.permute.xlu0 %1537
        %1540 = vset.pattern.permute.xlu0 16
        %1541 = vperm.xlu0 %1540, %v1283
        %v1542 = vpop.permute.xlu0 %1541
        %1544 = vset.pattern.permute.xlu0 16
        %1545 = vperm.xlu0 %1544, %v1284
        %v1546 = vpop.permute.xlu0 %1545
        %1548 = vset.pattern.permute.xlu0 16
        %1549 = vperm.xlu0 %1548, %v1285
        %v1550 = vpop.permute.xlu0 %1549
        %1552 = vset.pattern.permute.xlu0 16
        %1553 = vperm.xlu0 %1552, %v1286
        %v1554 = vpop.permute.xlu0 %1553
        %1556 = vset.pattern.permute.xlu0 16
        %1557 = vperm.xlu0 %1556, %v1287
        %v1558 = vpop.permute.xlu0 %1557
        %1560 = vset.pattern.permute.xlu0 16
        %1561 = vperm.xlu0 %1560, %v1288
        %v1562 = vpop.permute.xlu0 %1561
        %1564 = vset.pattern.permute.xlu0 16
        %1565 = vperm.xlu0 %1564, %v1289
        %v1566 = vpop.permute.xlu0 %1565
        %1568 = vset.pattern.permute.xlu0 16
        %1569 = vperm.xlu0 %1568, %v1290
        %v1570 = vpop.permute.xlu0 %1569
        %1572 = vset.pattern.permute.xlu0 16
        %1573 = vperm.xlu0 %1572, %v1291
        %v1574 = vpop.permute.xlu0 %1573
        %1576 = vset.pattern.permute.xlu0 16
        %1577 = vperm.xlu0 %1576, %v1292
        %v1578 = vpop.permute.xlu0 %1577
        %1580 = vset.pattern.permute.xlu0 16
        %1581 = vperm.xlu0 %1580, %v1293
        %v1582 = vpop.permute.xlu0 %1581
        %v1584 = vmul.f32 %v639, %v1458
        %v1585 = vmul.f32 %v641, %v1462
        %v1586 = vmul.f32 %v644, %v1466
        %v1587 = vmul.f32 %v646, %v1470
        %v1588 = vmul.f32 %v649, %v1474
        %v1589 = vmul.f32 %v651, %v1478
        %v1590 = vmul.f32 %v654, %v1482
        %v1591 = vmul.f32 %v656, %v1486
        %v1592 = vmul.f32 %v659, %v1490
        %v1593 = vmul.f32 %v661, %v1494
        %v1594 = vmul.f32 %v664, %v1498
        %v1595 = vmul.f32 %v666, %v1502
        %v1596 = vmul.f32 %v669, %v1506
        %v1597 = vmul.f32 %v671, %v1510
        %v1598 = vmul.f32 %v674, %v1514
        %v1599 = vmul.f32 %v676, %v1518
        %v1600 = vmul.f32 %v679, %v1522
        %v1601 = vmul.f32 %v681, %v1526
        %v1602 = vmul.f32 %v684, %v1530
        %v1603 = vmul.f32 %v686, %v1534
        %v1604 = vmul.f32 %v689, %v1538
        %v1605 = vmul.f32 %v691, %v1542
        %v1606 = vmul.f32 %v694, %v1546
        %v1607 = vmul.f32 %v696, %v1550
        %v1608 = vmul.f32 %v699, %v1554
        %v1609 = vmul.f32 %v701, %v1558
        %v1610 = vmul.f32 %v704, %v1562
        %v1611 = vmul.f32 %v706, %v1566
        %v1612 = vmul.f32 %v709, %v1570
        %v1613 = vmul.f32 %v711, %v1574
        %v1614 = vmul.f32 %v714, %v1578
        %v1615 = vmul.f32 %v716, %v1582
        %v1616 = vpack.c.bf16 %v1584, %v1584
        %v1617 = vpack.c.bf16 %v1585, %v1585
        %v1618 = vpack.c.bf16 %v1586, %v1586
        %v1619 = vpack.c.bf16 %v1587, %v1587
        %v1620 = vpack.c.bf16 %v1588, %v1588
        %v1621 = vpack.c.bf16 %v1589, %v1589
        %v1622 = vpack.c.bf16 %v1590, %v1590
        %v1623 = vpack.c.bf16 %v1591, %v1591
        %v1624 = vpack.c.bf16 %v1592, %v1592
        %v1625 = vpack.c.bf16 %v1593, %v1593
        %v1626 = vpack.c.bf16 %v1594, %v1594
        %v1627 = vpack.c.bf16 %v1595, %v1595
        %v1628 = vpack.c.bf16 %v1596, %v1596
        %v1629 = vpack.c.bf16 %v1597, %v1597
        %v1630 = vpack.c.bf16 %v1598, %v1598
        %v1631 = vpack.c.bf16 %v1599, %v1599
        %v1632 = vpack.c.bf16 %v1600, %v1600
        %v1633 = vpack.c.bf16 %v1601, %v1601
        %v1634 = vpack.c.bf16 %v1602, %v1602
        %v1635 = vpack.c.bf16 %v1603, %v1603
        %v1636 = vpack.c.bf16 %v1604, %v1604
        %v1637 = vpack.c.bf16 %v1605, %v1605
        %v1638 = vpack.c.bf16 %v1606, %v1606
        %v1639 = vpack.c.bf16 %v1607, %v1607
        %v1640 = vpack.c.bf16 %v1608, %v1608
        %v1641 = vpack.c.bf16 %v1609, %v1609
        %v1642 = vpack.c.bf16 %v1610, %v1610
        %v1643 = vpack.c.bf16 %v1611, %v1611
        %v1644 = vpack.c.bf16 %v1612, %v1612
        %v1645 = vpack.c.bf16 %v1613, %v1613
        %v1646 = vpack.c.bf16 %v1614, %v1614
        %v1647 = vpack.c.bf16 %v1615, %v1615
        %1648 = vst [vmem:[%s119] sm:$0xf] %v1616
        %1649 = vst [vmem:[%s119 + $0x4] sm:$0xf] %v1617
        %1650 = vst [vmem:[%s119 + $0x8] sm:$0xf] %v1618
        %1651 = vst [vmem:[%s119 + $0xc] sm:$0xf] %v1619
        %1652 = vst [vmem:[%s119 + $0x10] sm:$0xf] %v1620
        %1653 = vst [vmem:[%s119 + $0x14] sm:$0xf] %v1621
        %1654 = vst [vmem:[%s119 + $0x18] sm:$0xf] %v1622
        %1655 = vst [vmem:[%s119 + $0x1c] sm:$0xf] %v1623
        %1656 = vst [vmem:[%s119 + $0x20] sm:$0xf] %v1624
        %1657 = vst [vmem:[%s119 + $0x24] sm:$0xf] %v1625
        %1658 = vst [vmem:[%s119 + $0x28] sm:$0xf] %v1626
        %1659 = vst [vmem:[%s119 + $0x2c] sm:$0xf] %v1627
        %1660 = vst [vmem:[%s119 + $0x30] sm:$0xf] %v1628
        %1661 = vst [vmem:[%s119 + $0x34] sm:$0xf] %v1629
        %1662 = vst [vmem:[%s119 + $0x38] sm:$0xf] %v1630
        %1663 = vst [vmem:[%s119 + $0x3c] sm:$0xf] %v1631
        %1664 = vst [vmem:[%s119 + $0x40] sm:$0xf] %v1632
        %1665 = vst [vmem:[%s119 + $0x44] sm:$0xf] %v1633
        %1666 = vst [vmem:[%s119 + $0x48] sm:$0xf] %v1634
        %1667 = vst [vmem:[%s119 + $0x4c] sm:$0xf] %v1635
        %1668 = vst [vmem:[%s119 + $0x50] sm:$0xf] %v1636
        %1669 = vst [vmem:[%s119 + $0x54] sm:$0xf] %v1637
        %1670 = vst [vmem:[%s119 + $0x58] sm:$0xf] %v1638
        %1671 = vst [vmem:[%s119 + $0x5c] sm:$0xf] %v1639
        %1672 = vst [vmem:[%s119 + $0x60] sm:$0xf] %v1640
        %1673 = vst [vmem:[%s119 + $0x64] sm:$0xf] %v1641
        %1674 = vst [vmem:[%s119 + $0x68] sm:$0xf] %v1642
        %1675 = vst [vmem:[%s119 + $0x6c] sm:$0xf] %v1643
        %1676 = vst [vmem:[%s119 + $0x70] sm:$0xf] %v1644
        %1677 = vst [vmem:[%s119 + $0x74] sm:$0xf] %v1645
        %1678 = vst [vmem:[%s119 + $0x78] sm:$0xf] %v1646
        %1679 = vst [vmem:[%s119 + $0x7c] sm:$0xf] %v1647
        %p1680 = scmp.lt.s32.totalorder %s17, 1
        // Predicated region
        $region52: #{gin_noparam_forward.1} parent=50 // pred_check
          %p1681 = pneg %p1680
        $region53: #{gin_noparam_forward.1} parent=50 // pred_check_branch
          %1683 = sbr.rel (%p1681) target = $region55
        $region54: #{gin_noparam_forward.1} parent=50 // pred_region
          %s1684 = smul.addr %s212, 4
          %s1685 = scalar_lea.vmem [#allocation3], %s1684
          %1686 = vst [vmem:[%s1685] sm:$0xf] %v1616
          %1687 = vst [vmem:[%s1685 + $0x4] sm:$0xf] %v1617
          %1688 = vst [vmem:[%s1685 + $0x8] sm:$0xf] %v1618
          %1689 = vst [vmem:[%s1685 + $0xc] sm:$0xf] %v1619
          %1690 = vst [vmem:[%s1685 + $0x10] sm:$0xf] %v1620
          %1691 = vst [vmem:[%s1685 + $0x14] sm:$0xf] %v1621
          %1692 = vst [vmem:[%s1685 + $0x18] sm:$0xf] %v1622
          %1693 = vst [vmem:[%s1685 + $0x1c] sm:$0xf] %v1623
          %1694 = vst [vmem:[%s1685 + $0x20] sm:$0xf] %v1624
          %1695 = vst [vmem:[%s1685 + $0x24] sm:$0xf] %v1625
          %1696 = vst [vmem:[%s1685 + $0x28] sm:$0xf] %v1626
          %1697 = vst [vmem:[%s1685 + $0x2c] sm:$0xf] %v1627
          %1698 = vst [vmem:[%s1685 + $0x30] sm:$0xf] %v1628
          %1699 = vst [vmem:[%s1685 + $0x34] sm:$0xf] %v1629
          %1700 = vst [vmem:[%s1685 + $0x38] sm:$0xf] %v1630
          %1701 = vst [vmem:[%s1685 + $0x3c] sm:$0xf] %v1631
          %1702 = vst [vmem:[%s1685 + $0x40] sm:$0xf] %v1632
          %1703 = vst [vmem:[%s1685 + $0x44] sm:$0xf] %v1633
          %1704 = vst [vmem:[%s1685 + $0x48] sm:$0xf] %v1634
          %1705 = vst [vmem:[%s1685 + $0x4c] sm:$0xf] %v1635
          %1706 = vst [vmem:[%s1685 + $0x50] sm:$0xf] %v1636
          %1707 = vst [vmem:[%s1685 + $0x54] sm:$0xf] %v1637
          %1708 = vst [vmem:[%s1685 + $0x58] sm:$0xf] %v1638
          %1709 = vst [vmem:[%s1685 + $0x5c] sm:$0xf] %v1639
          %1710 = vst [vmem:[%s1685 + $0x60] sm:$0xf] %v1640
          %1711 = vst [vmem:[%s1685 + $0x64] sm:$0xf] %v1641
          %1712 = vst [vmem:[%s1685 + $0x68] sm:$0xf] %v1642
          %1713 = vst [vmem:[%s1685 + $0x6c] sm:$0xf] %v1643
          %1714 = vst [vmem:[%s1685 + $0x70] sm:$0xf] %v1644
          %1715 = vst [vmem:[%s1685 + $0x74] sm:$0xf] %v1645
          %1716 = vst [vmem:[%s1685 + $0x78] sm:$0xf] %v1646
          %1717 = vst [vmem:[%s1685 + $0x7c] sm:$0xf] %v1647
        $region55: #{gin_noparam_forward.1} parent=50 // pred_fallthru
          _
      $region51: #{gin_noparam_forward.1} parent=23 // pred_fallthru
        _
      %p1718 = scmp.gt.s32.totalorder %s17, 0
      // Predicated region
      $region56: #{gin_noparam_forward.1} parent=23 // pred_check
        %p1719 = pneg %p1718
      $region57: #{gin_noparam_forward.1} parent=23 // pred_check_branch
        %1721 = sbr.rel (%p1719) target = $region59
      $region58: #{gin_noparam_forward.1} parent=23 // pred_region
        %v1722 = vld [vmem:[#allocation3] sm:$0xf]
        %v1723 = vld [vmem:[#allocation3 + $0x4] sm:$0xf]
        %v1724 = vld [vmem:[#allocation3 + $0x8] sm:$0xf]
        %v1725 = vld [vmem:[#allocation3 + $0xc] sm:$0xf]
        %v1726 = vld [vmem:[#allocation3 + $0x10] sm:$0xf]
        %v1727 = vld [vmem:[#allocation3 + $0x14] sm:$0xf]
        %v1728 = vld [vmem:[#allocation3 + $0x18] sm:$0xf]
        %v1729 = vld [vmem:[#allocation3 + $0x1c] sm:$0xf]
        %v1730 = vld [vmem:[#allocation3 + $0x20] sm:$0xf]
        %v1731 = vld [vmem:[#allocation3 + $0x24] sm:$0xf]
        %v1732 = vld [vmem:[#allocation3 + $0x28] sm:$0xf]
        %v1733 = vld [vmem:[#allocation3 + $0x2c] sm:$0xf]
        %v1734 = vld [vmem:[#allocation3 + $0x30] sm:$0xf]
        %v1735 = vld [vmem:[#allocation3 + $0x34] sm:$0xf]
        %v1736 = vld [vmem:[#allocation3 + $0x38] sm:$0xf]
        %v1737 = vld [vmem:[#allocation3 + $0x3c] sm:$0xf]
        %v1738 = vld [vmem:[#allocation3 + $0x40] sm:$0xf]
        %v1739 = vld [vmem:[#allocation3 + $0x44] sm:$0xf]
        %v1740 = vld [vmem:[#allocation3 + $0x48] sm:$0xf]
        %v1741 = vld [vmem:[#allocation3 + $0x4c] sm:$0xf]
        %v1742 = vld [vmem:[#allocation3 + $0x50] sm:$0xf]
        %v1743 = vld [vmem:[#allocation3 + $0x54] sm:$0xf]
        %v1744 = vld [vmem:[#allocation3 + $0x58] sm:$0xf]
        %v1745 = vld [vmem:[#allocation3 + $0x5c] sm:$0xf]
        %v1746 = vld [vmem:[#allocation3 + $0x60] sm:$0xf]
        %v1747 = vld [vmem:[#allocation3 + $0x64] sm:$0xf]
        %v1748 = vld [vmem:[#allocation3 + $0x68] sm:$0xf]
        %v1749 = vld [vmem:[#allocation3 + $0x6c] sm:$0xf]
        %v1750 = vld [vmem:[#allocation3 + $0x70] sm:$0xf]
        %v1751 = vld [vmem:[#allocation3 + $0x74] sm:$0xf]
        %v1752 = vld [vmem:[#allocation3 + $0x78] sm:$0xf]
        %v1753 = vld [vmem:[#allocation3 + $0x7c] sm:$0xf]
        %v1786 = vunpack.c.l.b16 %v217
        %v1787 = vunpack.c.h.b16 %v217
        %v1788 = vunpack.c.l.b16 %v218
        %v1789 = vunpack.c.h.b16 %v218
        %v1790 = vunpack.c.l.b16 %v219
        %v1791 = vunpack.c.h.b16 %v219
        %v1792 = vunpack.c.l.b16 %v220
        %v1793 = vunpack.c.h.b16 %v220
        %v1794 = vunpack.c.l.b16 %v221
        %v1795 = vunpack.c.h.b16 %v221
        %v1796 = vunpack.c.l.b16 %v222
        %v1797 = vunpack.c.h.b16 %v222
        %v1798 = vunpack.c.l.b16 %v223
        %v1799 = vunpack.c.h.b16 %v223
        %v1800 = vunpack.c.l.b16 %v224
        %v1801 = vunpack.c.h.b16 %v224
        %v1802 = vunpack.c.l.b16 %v225
        %v1803 = vunpack.c.h.b16 %v225
        %v1804 = vunpack.c.l.b16 %v226
        %v1805 = vunpack.c.h.b16 %v226
        %v1806 = vunpack.c.l.b16 %v227
        %v1807 = vunpack.c.h.b16 %v227
        %v1808 = vunpack.c.l.b16 %v228
        %v1809 = vunpack.c.h.b16 %v228
        %v1810 = vunpack.c.l.b16 %v229
        %v1811 = vunpack.c.h.b16 %v229
        %v1812 = vunpack.c.l.b16 %v230
        %v1813 = vunpack.c.h.b16 %v230
        %v1814 = vunpack.c.l.b16 %v231
        %v1815 = vunpack.c.h.b16 %v231
        %v1816 = vunpack.c.l.b16 %v232
        %v1817 = vunpack.c.h.b16 %v232
        %v1818 = vunpack.c.l.b16 %v233
        %v1819 = vunpack.c.h.b16 %v233
        %v1820 = vunpack.c.l.b16 %v234
        %v1821 = vunpack.c.h.b16 %v234
        %v1822 = vunpack.c.l.b16 %v235
        %v1823 = vunpack.c.h.b16 %v235
        %v1824 = vunpack.c.l.b16 %v236
        %v1825 = vunpack.c.h.b16 %v236
        %v1826 = vunpack.c.l.b16 %v237
        %v1827 = vunpack.c.h.b16 %v237
        %v1828 = vunpack.c.l.b16 %v238
        %v1829 = vunpack.c.h.b16 %v238
        %v1830 = vunpack.c.l.b16 %v239
        %v1831 = vunpack.c.h.b16 %v239
        %v1832 = vunpack.c.l.b16 %v240
        %v1833 = vunpack.c.h.b16 %v240
        %v1834 = vunpack.c.l.b16 %v241
        %v1835 = vunpack.c.h.b16 %v241
        %v1836 = vunpack.c.l.b16 %v242
        %v1837 = vunpack.c.h.b16 %v242
        %v1838 = vunpack.c.l.b16 %v243
        %v1839 = vunpack.c.h.b16 %v243
        %v1840 = vunpack.c.l.b16 %v244
        %v1841 = vunpack.c.h.b16 %v244
        %v1842 = vunpack.c.l.b16 %v245
        %v1843 = vunpack.c.h.b16 %v245
        %v1844 = vunpack.c.l.b16 %v246
        %v1845 = vunpack.c.h.b16 %v246
        %v1846 = vunpack.c.l.b16 %v247
        %v1847 = vunpack.c.h.b16 %v247
        %v1848 = vunpack.c.l.b16 %v248
        %v1849 = vunpack.c.h.b16 %v248
        %v1850 = vpack.c.b16 %v1788, %v1786
        %v1851 = vpack.c.b16 %v1789, %v1787
        %v1852 = vpack.c.b16 %v1792, %v1790
        %v1853 = vpack.c.b16 %v1793, %v1791
        %v1854 = vpack.c.b16 %v1796, %v1794
        %v1855 = vpack.c.b16 %v1797, %v1795
        %v1856 = vpack.c.b16 %v1800, %v1798
        %v1857 = vpack.c.b16 %v1801, %v1799
        %v1858 = vpack.c.b16 %v1804, %v1802
        %v1859 = vpack.c.b16 %v1805, %v1803
        %v1860 = vpack.c.b16 %v1808, %v1806
        %v1861 = vpack.c.b16 %v1809, %v1807
        %v1862 = vpack.c.b16 %v1812, %v1810
        %v1863 = vpack.c.b16 %v1813, %v1811
        %v1864 = vpack.c.b16 %v1816, %v1814
        %v1865 = vpack.c.b16 %v1817, %v1815
        %v1866 = vpack.c.b16 %v1820, %v1818
        %v1867 = vpack.c.b16 %v1821, %v1819
        %v1868 = vpack.c.b16 %v1824, %v1822
        %v1869 = vpack.c.b16 %v1825, %v1823
        %v1870 = vpack.c.b16 %v1828, %v1826
        %v1871 = vpack.c.b16 %v1829, %v1827
        %v1872 = vpack.c.b16 %v1832, %v1830
        %v1873 = vpack.c.b16 %v1833, %v1831
        %v1874 = vpack.c.b16 %v1836, %v1834
        %v1875 = vpack.c.b16 %v1837, %v1835
        %v1876 = vpack.c.b16 %v1840, %v1838
        %v1877 = vpack.c.b16 %v1841, %v1839
        %v1878 = vpack.c.b16 %v1844, %v1842
        %v1879 = vpack.c.b16 %v1845, %v1843
        %v1880 = vpack.c.b16 %v1848, %v1846
        %v1881 = vpack.c.b16 %v1849, %v1847
        %v1946 = vunpack.c.l.b16 %v1722
        %v1947 = vunpack.c.l.b16 %v1723
        %v1948 = vunpack.c.l.b16 %v1724
        %v1949 = vunpack.c.l.b16 %v1725
        %v1950 = vunpack.c.l.b16 %v1726
        %v1951 = vunpack.c.l.b16 %v1727
        %v1952 = vunpack.c.l.b16 %v1728
        %v1953 = vunpack.c.l.b16 %v1729
        %v1954 = vunpack.c.l.b16 %v1730
        %v1955 = vunpack.c.l.b16 %v1731
        %v1956 = vunpack.c.l.b16 %v1732
        %v1957 = vunpack.c.l.b16 %v1733
        %v1958 = vunpack.c.l.b16 %v1734
        %v1959 = vunpack.c.l.b16 %v1735
        %v1960 = vunpack.c.l.b16 %v1736
        %v1961 = vunpack.c.l.b16 %v1737
        %v1962 = vunpack.c.l.b16 %v1738
        %v1963 = vunpack.c.l.b16 %v1739
        %v1964 = vunpack.c.l.b16 %v1740
        %v1965 = vunpack.c.l.b16 %v1741
        %v1966 = vunpack.c.l.b16 %v1742
        %v1967 = vunpack.c.l.b16 %v1743
        %v1968 = vunpack.c.l.b16 %v1744
        %v1969 = vunpack.c.l.b16 %v1745
        %v1970 = vunpack.c.l.b16 %v1746
        %v1971 = vunpack.c.l.b16 %v1747
        %v1972 = vunpack.c.l.b16 %v1748
        %v1973 = vunpack.c.l.b16 %v1749
        %v1974 = vunpack.c.l.b16 %v1750
        %v1975 = vunpack.c.l.b16 %v1751
        %v1976 = vunpack.c.l.b16 %v1752
        %v1977 = vunpack.c.l.b16 %v1753
        %v1978 = vpack.c.b16 %v1947, %v1946
        %v1979 = vpack.c.b16 %v1949, %v1948
        %v1980 = vpack.c.b16 %v1951, %v1950
        %v1981 = vpack.c.b16 %v1953, %v1952
        %v1982 = vpack.c.b16 %v1955, %v1954
        %v1983 = vpack.c.b16 %v1957, %v1956
        %v1984 = vpack.c.b16 %v1959, %v1958
        %v1985 = vpack.c.b16 %v1961, %v1960
        %v1986 = vpack.c.b16 %v1963, %v1962
        %v1987 = vpack.c.b16 %v1965, %v1964
        %v1988 = vpack.c.b16 %v1967, %v1966
        %v1989 = vpack.c.b16 %v1969, %v1968
        %v1990 = vpack.c.b16 %v1971, %v1970
        %v1991 = vpack.c.b16 %v1973, %v1972
        %v1992 = vpack.c.b16 %v1975, %v1974
        %v1993 = vpack.c.b16 %v1977, %v1976
        %2010 = vmatpush.bf16.msra.mxu0 %v1985
        %2011 = vmatpush.bf16.msra.mxu0 %v1984
        %2012 = vmatpush.bf16.msra.mxu0 %v1983
        %2013 = vmatpush.bf16.msra.mxu0 %v1982
        %2014 = vmatpush.bf16.msra.mxu0 %v1981
        %2015 = vmatpush.bf16.msra.mxu0 %v1980
        %2016 = vmatpush.bf16.msra.mxu0 %v1979
        %2017 = vmatpush.bf16.msra.mxu0 %v1978
        %2018 = vmatmul.bf16.gmra.mxu0 %v1850
        %v2019 = vpop.f32.mrf.mxu0
        %v2020 = vadd.f32 0.0, %v2019
        %v2021 = vpop.f32.mrf.mxu0
        %v2022 = vadd.f32 0.0, %v2021
        %2023 = vmatmul.bf16.gmra.mxu0 %v1852
        %v2024 = vpop.f32.mrf.mxu0
        %v2025 = vadd.f32 0.0, %v2024
        %v2026 = vpop.f32.mrf.mxu0
        %v2027 = vadd.f32 0.0, %v2026
        %2028 = vmatmul.bf16.gmra.mxu0 %v1854
        %v2029 = vpop.f32.mrf.mxu0
        %v2030 = vadd.f32 0.0, %v2029
        %v2031 = vpop.f32.mrf.mxu0
        %v2032 = vadd.f32 0.0, %v2031
        %2033 = vmatmul.bf16.gmra.mxu0 %v1856
        %v2034 = vpop.f32.mrf.mxu0
        %v2035 = vadd.f32 0.0, %v2034
        %v2036 = vpop.f32.mrf.mxu0
        %v2037 = vadd.f32 0.0, %v2036
        %2038 = vmatmul.bf16.gmra.mxu0 %v1858
        %v2039 = vpop.f32.mrf.mxu0
        %v2040 = vadd.f32 0.0, %v2039
        %v2041 = vpop.f32.mrf.mxu0
        %v2042 = vadd.f32 0.0, %v2041
        %2043 = vmatmul.bf16.gmra.mxu0 %v1860
        %v2044 = vpop.f32.mrf.mxu0
        %v2045 = vadd.f32 0.0, %v2044
        %v2046 = vpop.f32.mrf.mxu0
        %v2047 = vadd.f32 0.0, %v2046
        %2048 = vmatmul.bf16.gmra.mxu0 %v1862
        %v2049 = vpop.f32.mrf.mxu0
        %v2050 = vadd.f32 0.0, %v2049
        %v2051 = vpop.f32.mrf.mxu0
        %v2052 = vadd.f32 0.0, %v2051
        %2053 = vmatmul.bf16.gmra.mxu0 %v1864
        %v2054 = vpop.f32.mrf.mxu0
        %v2055 = vadd.f32 0.0, %v2054
        %v2056 = vpop.f32.mrf.mxu0
        %v2057 = vadd.f32 0.0, %v2056
        %2058 = vmatmul.bf16.gmra.mxu0 %v1866
        %v2059 = vpop.f32.mrf.mxu0
        %v2060 = vadd.f32 0.0, %v2059
        %v2061 = vpop.f32.mrf.mxu0
        %v2062 = vadd.f32 0.0, %v2061
        %2063 = vmatmul.bf16.gmra.mxu0 %v1868
        %v2064 = vpop.f32.mrf.mxu0
        %v2065 = vadd.f32 0.0, %v2064
        %v2066 = vpop.f32.mrf.mxu0
        %v2067 = vadd.f32 0.0, %v2066
        %2068 = vmatmul.bf16.gmra.mxu0 %v1870
        %v2069 = vpop.f32.mrf.mxu0
        %v2070 = vadd.f32 0.0, %v2069
        %v2071 = vpop.f32.mrf.mxu0
        %v2072 = vadd.f32 0.0, %v2071
        %2073 = vmatmul.bf16.gmra.mxu0 %v1872
        %v2074 = vpop.f32.mrf.mxu0
        %v2075 = vadd.f32 0.0, %v2074
        %v2076 = vpop.f32.mrf.mxu0
        %v2077 = vadd.f32 0.0, %v2076
        %2078 = vmatmul.bf16.gmra.mxu0 %v1874
        %v2079 = vpop.f32.mrf.mxu0
        %v2080 = vadd.f32 0.0, %v2079
        %v2081 = vpop.f32.mrf.mxu0
        %v2082 = vadd.f32 0.0, %v2081
        %2083 = vmatmul.bf16.gmra.mxu0 %v1876
        %v2084 = vpop.f32.mrf.mxu0
        %v2085 = vadd.f32 0.0, %v2084
        %v2086 = vpop.f32.mrf.mxu0
        %v2087 = vadd.f32 0.0, %v2086
        %2088 = vmatmul.bf16.gmra.mxu0 %v1878
        %v2089 = vpop.f32.mrf.mxu0
        %v2090 = vadd.f32 0.0, %v2089
        %v2091 = vpop.f32.mrf.mxu0
        %v2092 = vadd.f32 0.0, %v2091
        %2093 = vmatmul.bf16.gmra.mxu0 %v1880
        %v2094 = vpop.f32.mrf.mxu0
        %v2095 = vadd.f32 0.0, %v2094
        %v2096 = vpop.f32.mrf.mxu0
        %v2097 = vadd.f32 0.0, %v2096
        %2098 = vdwg.mxu0
        %2099 = vmatpush.bf16.msra.mxu0 %v1993
        %2100 = vmatpush.bf16.msra.mxu0 %v1992
        %2101 = vmatpush.bf16.msra.mxu0 %v1991
        %2102 = vmatpush.bf16.msra.mxu0 %v1990
        %2103 = vmatpush.bf16.msra.mxu0 %v1989
        %2104 = vmatpush.bf16.msra.mxu0 %v1988
        %2105 = vmatpush.bf16.msra.mxu0 %v1987
        %2106 = vmatpush.bf16.msra.mxu0 %v1986
        %2107 = vmatmul.bf16.gmra.mxu0 %v1851
        %v2108 = vpop.f32.mrf.mxu0
        %v2109 = vadd.f32 %v2020, %v2108
        %v2110 = vpop.f32.mrf.mxu0
        %v2111 = vadd.f32 %v2022, %v2110
        %2112 = vmatmul.bf16.gmra.mxu0 %v1853
        %v2113 = vpop.f32.mrf.mxu0
        %v2114 = vadd.f32 %v2025, %v2113
        %v2115 = vpop.f32.mrf.mxu0
        %v2116 = vadd.f32 %v2027, %v2115
        %2117 = vmatmul.bf16.gmra.mxu0 %v1855
        %v2118 = vpop.f32.mrf.mxu0
        %v2119 = vadd.f32 %v2030, %v2118
        %v2120 = vpop.f32.mrf.mxu0
        %v2121 = vadd.f32 %v2032, %v2120
        %2122 = vmatmul.bf16.gmra.mxu0 %v1857
        %v2123 = vpop.f32.mrf.mxu0
        %v2124 = vadd.f32 %v2035, %v2123
        %v2125 = vpop.f32.mrf.mxu0
        %v2126 = vadd.f32 %v2037, %v2125
        %2127 = vmatmul.bf16.gmra.mxu0 %v1859
        %v2128 = vpop.f32.mrf.mxu0
        %v2129 = vadd.f32 %v2040, %v2128
        %v2130 = vpop.f32.mrf.mxu0
        %v2131 = vadd.f32 %v2042, %v2130
        %2132 = vmatmul.bf16.gmra.mxu0 %v1861
        %v2133 = vpop.f32.mrf.mxu0
        %v2134 = vadd.f32 %v2045, %v2133
        %v2135 = vpop.f32.mrf.mxu0
        %v2136 = vadd.f32 %v2047, %v2135
        %2137 = vmatmul.bf16.gmra.mxu0 %v1863
        %v2138 = vpop.f32.mrf.mxu0
        %v2139 = vadd.f32 %v2050, %v2138
        %v2140 = vpop.f32.mrf.mxu0
        %v2141 = vadd.f32 %v2052, %v2140
        %2142 = vmatmul.bf16.gmra.mxu0 %v1865
        %v2143 = vpop.f32.mrf.mxu0
        %v2144 = vadd.f32 %v2055, %v2143
        %v2145 = vpop.f32.mrf.mxu0
        %v2146 = vadd.f32 %v2057, %v2145
        %2147 = vmatmul.bf16.gmra.mxu0 %v1867
        %v2148 = vpop.f32.mrf.mxu0
        %v2149 = vadd.f32 %v2060, %v2148
        %v2150 = vpop.f32.mrf.mxu0
        %v2151 = vadd.f32 %v2062, %v2150
        %2152 = vmatmul.bf16.gmra.mxu0 %v1869
        %v2153 = vpop.f32.mrf.mxu0
        %v2154 = vadd.f32 %v2065, %v2153
        %v2155 = vpop.f32.mrf.mxu0
        %v2156 = vadd.f32 %v2067, %v2155
        %2157 = vmatmul.bf16.gmra.mxu0 %v1871
        %v2158 = vpop.f32.mrf.mxu0
        %v2159 = vadd.f32 %v2070, %v2158
        %v2160 = vpop.f32.mrf.mxu0
        %v2161 = vadd.f32 %v2072, %v2160
        %2162 = vmatmul.bf16.gmra.mxu0 %v1873
        %v2163 = vpop.f32.mrf.mxu0
        %v2164 = vadd.f32 %v2075, %v2163
        %v2165 = vpop.f32.mrf.mxu0
        %v2166 = vadd.f32 %v2077, %v2165
        %2167 = vmatmul.bf16.gmra.mxu0 %v1875
        %v2168 = vpop.f32.mrf.mxu0
        %v2169 = vadd.f32 %v2080, %v2168
        %v2170 = vpop.f32.mrf.mxu0
        %v2171 = vadd.f32 %v2082, %v2170
        %2172 = vmatmul.bf16.gmra.mxu0 %v1877
        %v2173 = vpop.f32.mrf.mxu0
        %v2174 = vadd.f32 %v2085, %v2173
        %v2175 = vpop.f32.mrf.mxu0
        %v2176 = vadd.f32 %v2087, %v2175
        %2177 = vmatmul.bf16.gmra.mxu0 %v1879
        %v2178 = vpop.f32.mrf.mxu0
        %v2179 = vadd.f32 %v2090, %v2178
        %v2180 = vpop.f32.mrf.mxu0
        %v2181 = vadd.f32 %v2092, %v2180
        %2182 = vmatmul.bf16.gmra.mxu0 %v1881
        %v2183 = vpop.f32.mrf.mxu0
        %v2184 = vadd.f32 %v2095, %v2183
        %v2185 = vpop.f32.mrf.mxu0
        %v2186 = vadd.f32 %v2097, %v2185
        %2187 = vdwg.mxu0
        %s2188 = scalar_lea.vmem [#allocation4], %s121
        %v2189 = vld [vmem:[%s2188] sm:$0xff]
        %v2190 = vld [vmem:[%s2188 + $0x8] sm:$0xff]
        %v2191 = vld [vmem:[%s2188 + $0x10] sm:$0xff]
        %v2192 = vld [vmem:[%s2188 + $0x18] sm:$0xff]
        %v2193 = vld [vmem:[%s2188 + $0x20] sm:$0xff]
        %v2194 = vld [vmem:[%s2188 + $0x28] sm:$0xff]
        %v2195 = vld [vmem:[%s2188 + $0x30] sm:$0xff]
        %v2196 = vld [vmem:[%s2188 + $0x38] sm:$0xff]
        %v2197 = vld [vmem:[%s2188 + $0x40] sm:$0xff]
        %v2198 = vld [vmem:[%s2188 + $0x48] sm:$0xff]
        %v2199 = vld [vmem:[%s2188 + $0x50] sm:$0xff]
        %v2200 = vld [vmem:[%s2188 + $0x58] sm:$0xff]
        %v2201 = vld [vmem:[%s2188 + $0x60] sm:$0xff]
        %v2202 = vld [vmem:[%s2188 + $0x68] sm:$0xff]
        %v2203 = vld [vmem:[%s2188 + $0x70] sm:$0xff]
        %v2204 = vld [vmem:[%s2188 + $0x78] sm:$0xff]
        %v2205 = vld [vmem:[%s2188 + $0x80] sm:$0xff]
        %v2206 = vld [vmem:[%s2188 + $0x88] sm:$0xff]
        %v2207 = vld [vmem:[%s2188 + $0x90] sm:$0xff]
        %v2208 = vld [vmem:[%s2188 + $0x98] sm:$0xff]
        %v2209 = vld [vmem:[%s2188 + $0xa0] sm:$0xff]
        %v2210 = vld [vmem:[%s2188 + $0xa8] sm:$0xff]
        %v2211 = vld [vmem:[%s2188 + $0xb0] sm:$0xff]
        %v2212 = vld [vmem:[%s2188 + $0xb8] sm:$0xff]
        %v2213 = vld [vmem:[%s2188 + $0xc0] sm:$0xff]
        %v2214 = vld [vmem:[%s2188 + $0xc8] sm:$0xff]
        %v2215 = vld [vmem:[%s2188 + $0xd0] sm:$0xff]
        %v2216 = vld [vmem:[%s2188 + $0xd8] sm:$0xff]
        %v2217 = vld [vmem:[%s2188 + $0xe0] sm:$0xff]
        %v2218 = vld [vmem:[%s2188 + $0xe8] sm:$0xff]
        %v2219 = vld [vmem:[%s2188 + $0xf0] sm:$0xff]
        %v2220 = vld [vmem:[%s2188 + $0xf8] sm:$0xff]
        %2222 = vset.pattern.permute.xlu0 0
        %2223 = vperm.xlu0 %2222, %v2189
        %v2224 = vpop.permute.xlu0 %2223
        %2227 = vset.pattern.permute.xlu0 0
        %2228 = vperm.xlu0 %2227, %v2190
        %v2229 = vpop.permute.xlu0 %2228
        %2232 = vset.pattern.permute.xlu0 0
        %2233 = vperm.xlu0 %2232, %v2191
        %v2234 = vpop.permute.xlu0 %2233
        %2237 = vset.pattern.permute.xlu0 0
        %2238 = vperm.xlu0 %2237, %v2192
        %v2239 = vpop.permute.xlu0 %2238
        %2242 = vset.pattern.permute.xlu0 0
        %2243 = vperm.xlu0 %2242, %v2193
        %v2244 = vpop.permute.xlu0 %2243
        %2247 = vset.pattern.permute.xlu0 0
        %2248 = vperm.xlu0 %2247, %v2194
        %v2249 = vpop.permute.xlu0 %2248
        %2252 = vset.pattern.permute.xlu0 0
        %2253 = vperm.xlu0 %2252, %v2195
        %v2254 = vpop.permute.xlu0 %2253
        %2257 = vset.pattern.permute.xlu0 0
        %2258 = vperm.xlu0 %2257, %v2196
        %v2259 = vpop.permute.xlu0 %2258
        %2262 = vset.pattern.permute.xlu0 0
        %2263 = vperm.xlu0 %2262, %v2197
        %v2264 = vpop.permute.xlu0 %2263
        %2267 = vset.pattern.permute.xlu0 0
        %2268 = vperm.xlu0 %2267, %v2198
        %v2269 = vpop.permute.xlu0 %2268
        %2272 = vset.pattern.permute.xlu0 0
        %2273 = vperm.xlu0 %2272, %v2199
        %v2274 = vpop.permute.xlu0 %2273
        %2277 = vset.pattern.permute.xlu0 0
        %2278 = vperm.xlu0 %2277, %v2200
        %v2279 = vpop.permute.xlu0 %2278
        %2282 = vset.pattern.permute.xlu0 0
        %2283 = vperm.xlu0 %2282, %v2201
        %v2284 = vpop.permute.xlu0 %2283
        %2287 = vset.pattern.permute.xlu0 0
        %2288 = vperm.xlu0 %2287, %v2202
        %v2289 = vpop.permute.xlu0 %2288
        %2292 = vset.pattern.permute.xlu0 0
        %2293 = vperm.xlu0 %2292, %v2203
        %v2294 = vpop.permute.xlu0 %2293
        %2297 = vset.pattern.permute.xlu0 0
        %2298 = vperm.xlu0 %2297, %v2204
        %v2299 = vpop.permute.xlu0 %2298
        %2302 = vset.pattern.permute.xlu0 0
        %2303 = vperm.xlu0 %2302, %v2205
        %v2304 = vpop.permute.xlu0 %2303
        %2307 = vset.pattern.permute.xlu0 0
        %2308 = vperm.xlu0 %2307, %v2206
        %v2309 = vpop.permute.xlu0 %2308
        %2312 = vset.pattern.permute.xlu0 0
        %2313 = vperm.xlu0 %2312, %v2207
        %v2314 = vpop.permute.xlu0 %2313
        %2317 = vset.pattern.permute.xlu0 0
        %2318 = vperm.xlu0 %2317, %v2208
        %v2319 = vpop.permute.xlu0 %2318
        %2322 = vset.pattern.permute.xlu0 0
        %2323 = vperm.xlu0 %2322, %v2209
        %v2324 = vpop.permute.xlu0 %2323
        %2327 = vset.pattern.permute.xlu0 0
        %2328 = vperm.xlu0 %2327, %v2210
        %v2329 = vpop.permute.xlu0 %2328
        %2332 = vset.pattern.permute.xlu0 0
        %2333 = vperm.xlu0 %2332, %v2211
        %v2334 = vpop.permute.xlu0 %2333
        %2337 = vset.pattern.permute.xlu0 0
        %2338 = vperm.xlu0 %2337, %v2212
        %v2339 = vpop.permute.xlu0 %2338
        %2342 = vset.pattern.permute.xlu0 0
        %2343 = vperm.xlu0 %2342, %v2213
        %v2344 = vpop.permute.xlu0 %2343
        %2347 = vset.pattern.permute.xlu0 0
        %2348 = vperm.xlu0 %2347, %v2214
        %v2349 = vpop.permute.xlu0 %2348
        %2352 = vset.pattern.permute.xlu0 0
        %2353 = vperm.xlu0 %2352, %v2215
        %v2354 = vpop.permute.xlu0 %2353
        %2357 = vset.pattern.permute.xlu0 0
        %2358 = vperm.xlu0 %2357, %v2216
        %v2359 = vpop.permute.xlu0 %2358
        %2362 = vset.pattern.permute.xlu0 0
        %2363 = vperm.xlu0 %2362, %v2217
        %v2364 = vpop.permute.xlu0 %2363
        %2367 = vset.pattern.permute.xlu0 0
        %2368 = vperm.xlu0 %2367, %v2218
        %v2369 = vpop.permute.xlu0 %2368
        %2372 = vset.pattern.permute.xlu0 0
        %2373 = vperm.xlu0 %2372, %v2219
        %v2374 = vpop.permute.xlu0 %2373
        %2377 = vset.pattern.permute.xlu0 0
        %2378 = vperm.xlu0 %2377, %v2220
        %v2379 = vpop.permute.xlu0 %2378
        %v2381 = vmul.f32 %v2109, %v2224
        %v2382 = vmul.f32 %v2111, %v2229
        %v2383 = vmul.f32 %v2114, %v2234
        %v2384 = vmul.f32 %v2116, %v2239
        %v2385 = vmul.f32 %v2119, %v2244
        %v2386 = vmul.f32 %v2121, %v2249
        %v2387 = vmul.f32 %v2124, %v2254
        %v2388 = vmul.f32 %v2126, %v2259
        %v2389 = vmul.f32 %v2129, %v2264
        %v2390 = vmul.f32 %v2131, %v2269
        %v2391 = vmul.f32 %v2134, %v2274
        %v2392 = vmul.f32 %v2136, %v2279
        %v2393 = vmul.f32 %v2139, %v2284
        %v2394 = vmul.f32 %v2141, %v2289
        %v2395 = vmul.f32 %v2144, %v2294
        %v2396 = vmul.f32 %v2146, %v2299
        %v2397 = vmul.f32 %v2149, %v2304
        %v2398 = vmul.f32 %v2151, %v2309
        %v2399 = vmul.f32 %v2154, %v2314
        %v2400 = vmul.f32 %v2156, %v2319
        %v2401 = vmul.f32 %v2159, %v2324
        %v2402 = vmul.f32 %v2161, %v2329
        %v2403 = vmul.f32 %v2164, %v2334
        %v2404 = vmul.f32 %v2166, %v2339
        %v2405 = vmul.f32 %v2169, %v2344
        %v2406 = vmul.f32 %v2171, %v2349
        %v2407 = vmul.f32 %v2174, %v2354
        %v2408 = vmul.f32 %v2176, %v2359
        %v2409 = vmul.f32 %v2179, %v2364
        %v2410 = vmul.f32 %v2181, %v2369
        %v2411 = vmul.f32 %v2184, %v2374
        %v2412 = vmul.f32 %v2186, %v2379
        %v2413 = vpack.c.bf16 %v2381, %v2381
        %v2414 = vpack.c.bf16 %v2382, %v2382
        %v2415 = vpack.c.bf16 %v2383, %v2383
        %v2416 = vpack.c.bf16 %v2384, %v2384
        %v2417 = vpack.c.bf16 %v2385, %v2385
        %v2418 = vpack.c.bf16 %v2386, %v2386
        %v2419 = vpack.c.bf16 %v2387, %v2387
        %v2420 = vpack.c.bf16 %v2388, %v2388
        %v2421 = vpack.c.bf16 %v2389, %v2389
        %v2422 = vpack.c.bf16 %v2390, %v2390
        %v2423 = vpack.c.bf16 %v2391, %v2391
        %v2424 = vpack.c.bf16 %v2392, %v2392
        %v2425 = vpack.c.bf16 %v2393, %v2393
        %v2426 = vpack.c.bf16 %v2394, %v2394
        %v2427 = vpack.c.bf16 %v2395, %v2395
        %v2428 = vpack.c.bf16 %v2396, %v2396
        %v2429 = vpack.c.bf16 %v2397, %v2397
        %v2430 = vpack.c.bf16 %v2398, %v2398
        %v2431 = vpack.c.bf16 %v2399, %v2399
        %v2432 = vpack.c.bf16 %v2400, %v2400
        %v2433 = vpack.c.bf16 %v2401, %v2401
        %v2434 = vpack.c.bf16 %v2402, %v2402
        %v2435 = vpack.c.bf16 %v2403, %v2403
        %v2436 = vpack.c.bf16 %v2404, %v2404
        %v2437 = vpack.c.bf16 %v2405, %v2405
        %v2438 = vpack.c.bf16 %v2406, %v2406
        %v2439 = vpack.c.bf16 %v2407, %v2407
        %v2440 = vpack.c.bf16 %v2408, %v2408
        %v2441 = vpack.c.bf16 %v2409, %v2409
        %v2442 = vpack.c.bf16 %v2410, %v2410
        %v2443 = vpack.c.bf16 %v2411, %v2411
        %v2444 = vpack.c.bf16 %v2412, %v2412
        %2445 = vst [vmem:[%s119] sm:$0xf] %v2413
        %2446 = vst [vmem:[%s119 + $0x4] sm:$0xf] %v2414
        %2447 = vst [vmem:[%s119 + $0x8] sm:$0xf] %v2415
        %2448 = vst [vmem:[%s119 + $0xc] sm:$0xf] %v2416
        %2449 = vst [vmem:[%s119 + $0x10] sm:$0xf] %v2417
        %2450 = vst [vmem:[%s119 + $0x14] sm:$0xf] %v2418
        %2451 = vst [vmem:[%s119 + $0x18] sm:$0xf] %v2419
        %2452 = vst [vmem:[%s119 + $0x1c] sm:$0xf] %v2420
        %2453 = vst [vmem:[%s119 + $0x20] sm:$0xf] %v2421
        %2454 = vst [vmem:[%s119 + $0x24] sm:$0xf] %v2422
        %2455 = vst [vmem:[%s119 + $0x28] sm:$0xf] %v2423
        %2456 = vst [vmem:[%s119 + $0x2c] sm:$0xf] %v2424
        %2457 = vst [vmem:[%s119 + $0x30] sm:$0xf] %v2425
        %2458 = vst [vmem:[%s119 + $0x34] sm:$0xf] %v2426
        %2459 = vst [vmem:[%s119 + $0x38] sm:$0xf] %v2427
        %2460 = vst [vmem:[%s119 + $0x3c] sm:$0xf] %v2428
        %2461 = vst [vmem:[%s119 + $0x40] sm:$0xf] %v2429
        %2462 = vst [vmem:[%s119 + $0x44] sm:$0xf] %v2430
        %2463 = vst [vmem:[%s119 + $0x48] sm:$0xf] %v2431
        %2464 = vst [vmem:[%s119 + $0x4c] sm:$0xf] %v2432
        %2465 = vst [vmem:[%s119 + $0x50] sm:$0xf] %v2433
        %2466 = vst [vmem:[%s119 + $0x54] sm:$0xf] %v2434
        %2467 = vst [vmem:[%s119 + $0x58] sm:$0xf] %v2435
        %2468 = vst [vmem:[%s119 + $0x5c] sm:$0xf] %v2436
        %2469 = vst [vmem:[%s119 + $0x60] sm:$0xf] %v2437
        %2470 = vst [vmem:[%s119 + $0x64] sm:$0xf] %v2438
        %2471 = vst [vmem:[%s119 + $0x68] sm:$0xf] %v2439
        %2472 = vst [vmem:[%s119 + $0x6c] sm:$0xf] %v2440
        %2473 = vst [vmem:[%s119 + $0x70] sm:$0xf] %v2441
        %2474 = vst [vmem:[%s119 + $0x74] sm:$0xf] %v2442
        %2475 = vst [vmem:[%s119 + $0x78] sm:$0xf] %v2443
        %2476 = vst [vmem:[%s119 + $0x7c] sm:$0xf] %v2444
        %p2477 = scmp.lt.s32.totalorder %s17, 1
        // Predicated region
        $region60: #{gin_noparam_forward.1} parent=58 // pred_check
          %p2478 = pneg %p2477
        $region61: #{gin_noparam_forward.1} parent=58 // pred_check_branch
          %2480 = sbr.rel (%p2478) target = $region63
        $region62: #{gin_noparam_forward.1} parent=58 // pred_region
          %s2481 = smul.addr %s212, 4
          %s2482 = scalar_lea.vmem [#allocation3], %s2481
          %2483 = vst [vmem:[%s2482] sm:$0xf] %v2413
          %2484 = vst [vmem:[%s2482 + $0x4] sm:$0xf] %v2414
          %2485 = vst [vmem:[%s2482 + $0x8] sm:$0xf] %v2415
          %2486 = vst [vmem:[%s2482 + $0xc] sm:$0xf] %v2416
          %2487 = vst [vmem:[%s2482 + $0x10] sm:$0xf] %v2417
          %2488 = vst [vmem:[%s2482 + $0x14] sm:$0xf] %v2418
          %2489 = vst [vmem:[%s2482 + $0x18] sm:$0xf] %v2419
          %2490 = vst [vmem:[%s2482 + $0x1c] sm:$0xf] %v2420
          %2491 = vst [vmem:[%s2482 + $0x20] sm:$0xf] %v2421
          %2492 = vst [vmem:[%s2482 + $0x24] sm:$0xf] %v2422
          %2493 = vst [vmem:[%s2482 + $0x28] sm:$0xf] %v2423
          %2494 = vst [vmem:[%s2482 + $0x2c] sm:$0xf] %v2424
          %2495 = vst [vmem:[%s2482 + $0x30] sm:$0xf] %v2425
          %2496 = vst [vmem:[%s2482 + $0x34] sm:$0xf] %v2426
          %2497 = vst [vmem:[%s2482 + $0x38] sm:$0xf] %v2427
          %2498 = vst [vmem:[%s2482 + $0x3c] sm:$0xf] %v2428
          %2499 = vst [vmem:[%s2482 + $0x40] sm:$0xf] %v2429
          %2500 = vst [vmem:[%s2482 + $0x44] sm:$0xf] %v2430
          %2501 = vst [vmem:[%s2482 + $0x48] sm:$0xf] %v2431
          %2502 = vst [vmem:[%s2482 + $0x4c] sm:$0xf] %v2432
          %2503 = vst [vmem:[%s2482 + $0x50] sm:$0xf] %v2433
          %2504 = vst [vmem:[%s2482 + $0x54] sm:$0xf] %v2434
          %2505 = vst [vmem:[%s2482 + $0x58] sm:$0xf] %v2435
          %2506 = vst [vmem:[%s2482 + $0x5c] sm:$0xf] %v2436
          %2507 = vst [vmem:[%s2482 + $0x60] sm:$0xf] %v2437
          %2508 = vst [vmem:[%s2482 + $0x64] sm:$0xf] %v2438
          %2509 = vst [vmem:[%s2482 + $0x68] sm:$0xf] %v2439
          %2510 = vst [vmem:[%s2482 + $0x6c] sm:$0xf] %v2440
          %2511 = vst [vmem:[%s2482 + $0x70] sm:$0xf] %v2441
          %2512 = vst [vmem:[%s2482 + $0x74] sm:$0xf] %v2442
          %2513 = vst [vmem:[%s2482 + $0x78] sm:$0xf] %v2443
          %2514 = vst [vmem:[%s2482 + $0x7c] sm:$0xf] %v2444
        $region63: #{gin_noparam_forward.1} parent=58 // pred_fallthru
          _
      $region59: #{gin_noparam_forward.1} parent=23 // pred_fallthru
        _
      %s2515 = smul.u32 32, %s18
      %p2516 = scmp.lt.s32.totalorder %s17, 1
      %s2517 = scalar_select %p2516, %s17, 1
      %p2518 = scmp.lt.s32.totalorder %s2515, 31
      %s2519 = scalar_select %p2518, %s2515, 31
      %s2520 = smul.addr %s2517, 32
      %s2521 = sadd.s32 %s2519, %s2520
      %s2522 = smul.addr %s2521, 4
      %s2523 = scalar_lea.vmem %s2, %s2522
      // Predicated region
      $region64: #{gin_noparam_forward.1} parent=23 // pred_check
        %p2524 = pneg %p66
      $region65: #{gin_noparam_forward.1} parent=23 // pred_check_branch
        %2526 = sbr.rel (%p2524) target = $region67
      $region66: #{gin_noparam_forward.1} parent=23 // pred_region
        %s2527 = smul.u32 32, %s18
      $region67: #{gin_noparam_forward.1} parent=23 // pred_fallthru
        _
    $region24: #{gin_noparam_forward.1} parent=5 // pred_fallthru
      _
    %p2528 = scmp.le.s32.totalorder 2, %s8
    // Predicated region
    $region68: #{gin_noparam_forward.1} parent=5 // pred_check
      %p2529 = pneg %p2528
    $region69: #{gin_noparam_forward.1} parent=5 // pred_check_branch
      %2531 = sbr.rel (%p2529) target = $region71
    $region70: #{gin_noparam_forward.1} parent=5 // pred_region
      %s2532 = ssub.s32 %s8, 2
      // Predicated region
      $region72: #{gin_noparam_forward.1} parent=70 // pred_check
        %p2533 = pneg %p72
      $region73: #{gin_noparam_forward.1} parent=70 // pred_check_branch
        %2535 = sbr.rel (%p2533) target = $region75
      $region74: #{gin_noparam_forward.1} parent=70 // pred_region
        %s2536 = smul.u32 32, %s20
        %p2537 = scmp.lt.s32.totalorder %s19, 1
        %s2538 = scalar_select %p2537, %s19, 1
        %p2539 = scmp.lt.s32.totalorder %s2536, 31
        %s2540 = scalar_select %p2539, %s2536, 31
        %s2541 = smul.addr %s2538, 32
        %s2542 = sadd.s32 %s2540, %s2541
        %s2543 = smul.addr %s2542, 4
        %s2544 = scalar_lea.vmem %s2, %s2543
      $region75: #{gin_noparam_forward.1} parent=70 // pred_fallthru
        _
    $region71: #{gin_noparam_forward.1} parent=5 // pred_fallthru
      _
  $region6: #{gin_noparam_forward.1} parent=0 // loop_footer
    %s12 = sadd.s32 1, %s8
  $region7: #{gin_noparam_forward.1} parent=0 // loop_footer_branch
    %7 = sbr.rel target = $region3
  $region8: #{gin_noparam_forward.1} parent=0 // loop_exit
    _
  %2545 = vsyncmov [#allocation5]
  %s2546 = vpop.sfrf %2545
  %p2547 = scmp.eq.s32.totalorder %s2546, 0
  %p2548 = pneg %p2547
  %2550 = shalt.err (%p2548)

</llo_original>
